<compile_context>
chip_gen: v6e
topology: v6e:2x2x1
jax: 0.10.0
libtpu: 0.0.40
codegen_flags: <defaults>
</compile_context>

<pallas_src>
import functools

import jax
import jax.numpy as jnp
import numpy as np
from jax.experimental import pallas as pl
from jax.experimental.pallas import tpu as pltpu


def _make_sam_kernel(W, SH, CF, mxu_dtype=None):
    N = SH * W                 # output pixels per strip
    NE = (SH + 2) * W          # extended region (strip +- one halo row)
    CO = CF + 3                # fused conv1+conv2 output channels
    PADX = W + 128             # x-slab left pad (interior store lands at a lane tile)
    LX = NE + 2 * PADX         # x slab length
    LI = NE + 256              # img slab length: 128 | img_ext | 128
    S0 = 127                   # flat offset of tap (dy=0, dx=0) in both slabs

    def mx(v):
        return v if mxu_dtype is None else v.astype(mxu_dtype)

    def kernel(x_ref, xh_ref, xi_ref, xih_ref, m_ref,
               w12_ref, b12_ref, w3_ref, b3_ref,
               x1_ref, img_ref, xpad_ref, imgpad_ref):
        s = pl.program_id(1)
        ns = pl.num_programs(1)

        mask_l = m_ref[0:1, :]                       # (1, NE): 0 where col == 0
        mask_r = m_ref[1:2, :]                       # (1, NE): 0 where col == W-1

        # ---- stage x into a row-padded flat slab (in-kernel halo staging) ----
        zc = jnp.zeros((CF, 1), jnp.float32)
        xpad_ref[:, S0:S0 + 1] = zc                              # masked corner elems
        xpad_ref[:, PADX + NE + W:PADX + NE + W + 1] = zc
        xh = xh_ref[0, 0]                                        # (CF, 4*W) halo rows
        xpad_ref[:, PADX - W:PADX + W] = xh[:, :2 * W]           # rows r0-2, r0-1
        xpad_ref[:, PADX + W:PADX + W + N] = x_ref[0]            # strip rows
        xpad_ref[:, PADX + W + N:PADX + NE + W] = xh[:, 2 * W:]  # rows r0+SH, r0+SH+1

        # ---- conv1 + conv2 (fused along Cout): ONE stacked-tap MXU call ----
        pieces = []
        for dy in range(3):
            for dx in range(3):
                off = S0 + dy * W + dx
                v = xpad_ref[:, off:off + NE]                    # (CF, NE) ref slice
                if dx == 0:
                    v = v * mask_l
                elif dx == 2:
                    v = v * mask_r
                pieces.append(v)
        stacked = jnp.concatenate(pieces, axis=0)                # (9*CF, NE)
        acc12 = jnp.dot(mx(w12_ref[...]), mx(stacked),
                        preferred_element_type=jnp.float32) + b12_ref[...]

        x1 = acc12[:CF, W:W + N]                                 # conv1(x)+b1, strip rows

        xih = xih_ref[0, 0]                                      # (3, 2*W) x_img halos
        ximg_ext = jnp.concatenate([xih[:, :W], xi_ref[0], xih[:, W:]], axis=1)
        img_ext = acc12[CF:, :] + ximg_ext                       # img on strip rows +- 1
        img_ref[0] = img_ext[:, W:W + N]

        # conv3 zero-pads img at the image border: kill out-of-image halo rows.
        vt = (s > 0).astype(jnp.float32)
        vb = (s < ns - 1).astype(jnp.float32)
        hscale = jnp.concatenate(
            [jnp.ones((1, W), jnp.float32) * vt,
             jnp.ones((1, N), jnp.float32),
             jnp.ones((1, W), jnp.float32) * vb], axis=1)        # (1, NE)

        # ---- stage img into its padded slab (aligned interior store) ----
        z3 = jnp.zeros((3, 1), jnp.float32)
        imgpad_ref[:, S0:S0 + 1] = z3
        imgpad_ref[:, 128 + NE:129 + NE] = z3
        imgpad_ref[:, 128:128 + NE] = img_ext * hscale

        # ---- conv3: ONE stacked-tap MXU call ----
        ml = mask_l[:, :N]
        mr = mask_r[:, :N]
        pieces3 = []
        for dy in range(3):
            for dx in range(3):
                off = S0 + dy * W + dx
                v = imgpad_ref[:, off:off + N]                   # (3, N) ref slice
                if dx == 0:
                    v = v * ml
                elif dx == 2:
                    v = v * mr
                pieces3.append(v)
        stacked3 = jnp.concatenate(pieces3, axis=0)              # (27, N)
        pre3 = jnp.dot(mx(w3_ref[...]), mx(stacked3),
                       preferred_element_type=jnp.float32) + b3_ref[...]
        x2 = jax.nn.sigmoid(pre3)

        x1_ref[0] = x1 * x2 + x_ref[0]

    return kernel, LX, LI


def _pick_strip_rows(H, W, CF, budget_bytes=8 << 20):
    """Largest strip height (divides H, lane-aligned strip) within a VMEM budget."""
    # dominant per-row VMEM: x slab + 9*CF stacked operand + acc + img slab + conv3 stack
    per_row = 4 * W * (13 * CF + 64)
    cap = max(1, budget_bytes // per_row - 2)
    if cap >= H:
        return H
    for d in range(min(cap, H), 0, -1):
        if H % d == 0 and (d * W) % 128 == 0:
            return d
    return H


@functools.partial(jax.jit, static_argnames=("strip_rows", "mxu_dtype"))
def sam_forward(x, x_img, w1, b1, w2, b2, w3, b3, *, strip_rows=None, mxu_dtype=None):
    """SAM forward.  x: (B, n_feat, H, W); x_img: (B, 3, H, W); weights OIHW."""
    B, CF, H, W = x.shape
    HW = H * W
    CO = CF + 3

    SH = _pick_strip_rows(H, W, CF) if strip_rows is None else int(strip_rows)
    if H % SH != 0 or (SH != H and (SH * W) % 128 != 0):
        raise ValueError("strip_rows must divide H and give a lane-aligned strip")
    NS = H // SH
    N = SH * W
    NE = (SH + 2) * W

    xf = x.reshape(B, CF, HW).astype(jnp.float32)       # channel-major, lane = HW
    xif = x_img.reshape(B, 3, HW).astype(jnp.float32)

    # Per-strip halo rows (4 for x, 2 for x_img), zeros outside the image.
    x4 = x.reshape(B, CF, H, W).astype(jnp.float32)
    xi4 = x_img.reshape(B, 3, H, W).astype(jnp.float32)
    r0 = np.arange(NS) * SH
    xrows = np.stack([r0 - 2, r0 - 1, r0 + SH, r0 + SH + 1], axis=1)    # (NS, 4)
    irows = np.stack([r0 - 1, r0 + SH], axis=1)                         # (NS, 2)

    def gather_halo(arr, rows, C, k):
        valid = jnp.asarray(((rows >= 0) & (rows < H)).astype(np.float32).reshape(-1))
        idx = jnp.asarray(np.clip(rows, 0, H - 1).reshape(-1).astype(np.int32))
        h = jnp.take(arr, idx, axis=2) * valid[None, None, :, None]     # (B, C, NS*k, W)
        return h.reshape(B, C, NS, k, W).transpose(0, 2, 1, 3, 4).reshape(B, NS, C, k * W)

    xhalo = gather_halo(x4, xrows, CF, 4)       # (B, NS, CF, 4*W)
    xihalo = gather_halo(xi4, irows, 3, 2)      # (B, NS, 3, 2*W)

    # Column masks that kill horizontal wrap-around of the flat tap views.
    col = np.arange(NE) % W
    masks = jnp.asarray(np.stack([col != 0, col != W - 1]).astype(np.float32))

    # Fuse conv1/conv2 along Cout; OIHW -> (Cout, 9*Cin), tap-major columns.
    w12 = jnp.concatenate([w1, w2], axis=0).astype(jnp.float32)          # (CO, CF, 3, 3)
    w12f = jnp.transpose(w12, (0, 2, 3, 1)).reshape(CO, 9 * CF)
    w3f = jnp.transpose(w3.astype(jnp.float32), (0, 2, 3, 1)).reshape(CF, 27)
    if mxu_dtype is not None:
        w12f = w12f.astype(mxu_dtype)
        w3f = w3f.astype(mxu_dtype)
    b12 = jnp.concatenate([b1, b2]).astype(jnp.float32).reshape(CO, 1)
    b3r = b3.astype(jnp.float32).reshape(CF, 1)

    kernel, LX, LI = _make_sam_kernel(W, SH, CF, mxu_dtype)

    cost = pl.CostEstimate(
        flops=int(B * NS * (2 * CO * 9 * CF * NE + 2 * CF * 27 * N + 8 * CF * N)),
        transcendentals=int(B * CF * HW),
        bytes_accessed=int(4 * (2 * B * CF * HW + 2 * B * 3 * HW
                                + B * NS * (4 * CF * W + 6 * W)
                                + 2 * NE + CO * (9 * CF + 1) + CF * 28)))

    x1_flat, img_flat = pl.pallas_call(
        kernel,
        out_shape=(jax.ShapeDtypeStruct((B, CF, HW), jnp.float32),
                   jax.ShapeDtypeStruct((B, 3, HW), jnp.float32)),
        grid_spec=pltpu.PrefetchScalarGridSpec(
            num_scalar_prefetch=0,
            grid=(B, NS),
            in_specs=[
                pl.BlockSpec((1, CF, N), lambda b, s: (b, 0, s)),
                pl.BlockSpec((1, 1, CF, 4 * W), lambda b, s: (b, s, 0, 0)),
                pl.BlockSpec((1, 3, N), lambda b, s: (b, 0, s)),
                pl.BlockSpec((1, 1, 3, 2 * W), lambda b, s: (b, s, 0, 0)),
                pl.BlockSpec((2, NE), lambda b, s: (0, 0)),
                pl.BlockSpec((CO, 9 * CF), lambda b, s: (0, 0)),
                pl.BlockSpec((CO, 1), lambda b, s: (0, 0)),
                pl.BlockSpec((CF, 27), lambda b, s: (0, 0)),
                pl.BlockSpec((CF, 1), lambda b, s: (0, 0)),
            ],
            out_specs=[
                pl.BlockSpec((1, CF, N), lambda b, s: (b, 0, s)),
                pl.BlockSpec((1, 3, N), lambda b, s: (b, 0, s)),
            ],
            scratch_shapes=[pltpu.VMEM((CF, LX), jnp.float32),
                            pltpu.VMEM((3, LI), jnp.float32)],
        ),
        compiler_params=pltpu.CompilerParams(
            dimension_semantics=("parallel", "parallel"),
            vmem_limit_bytes=64 * 1024 * 1024),
        cost_estimate=cost,
    )(xf, xhalo, xif, xihalo, masks, w12f, b12, w3f, b3r)

    # channel-major flat layout matches NCHW natively -- no transposes.
    return x1_flat.reshape(B, CF, H, W), img_flat.reshape(B, 3, H, W)


# ------------------------- reference & test harness -------------------------

def _conv_ref(x, w, b):
    y = jax.lax.conv_general_dilated(
        x, w, window_strides=(1, 1), padding=((1, 1), (1, 1)),
        dimension_numbers=("NCHW", "OIHW", "NCHW"))
    return y + b[None, :, None, None]


def sam_ref(x, x_img, w1, b1, w2, b2, w3, b3):
    x1 = _conv_ref(x, w1, b1)
    img = _conv_ref(x, w2, b2) + x_img
    x2 = jax.nn.sigmoid(_conv_ref(img, w3, b3))
    return x1 * x2 + x, img


def _init_conv(key, cout, cin, k=3):
    # mimic PyTorch Conv2d default init (uniform +/- 1/sqrt(fan_in))
    kw, kb = jax.random.split(key)
    fan_in = cin * k * k
    bound = 1.0 / np.sqrt(fan_in)
    w = jax.random.uniform(kw, (cout, cin, k, k), jnp.float32, -bound, bound)
    b = jax.random.uniform(kb, (cout,), jnp.float32, -bound, bound)
    return w, b


if __name__ == "__main__":
    key = jax.random.PRNGKey(0)
    k_x, k_img, k1, k2, k3 = jax.random.split(key, 5)

    B, n_feat, H, W = 2, 4, 16, 16
    x = jax.random.normal(k_x, (B, n_feat, H, W), jnp.float32)
    x_img = jax.random.normal(k_img, (B, 3, H, W), jnp.float32)

    w1, b1 = _init_conv(k1, n_feat, n_feat)   # conv1: n_feat -> n_feat
    w2, b2 = _init_conv(k2, 3, n_feat)        # conv2: n_feat -> 3
    w3, b3 = _init_conv(k3, n_feat, 3)        # conv3: 3 -> n_feat

    ref_x1, ref_img = sam_ref(x, x_img, w1, b1, w2, b2, w3, b3)

    # Auto strip choice (whole image at this tiny size) ...
    out_a = sam_forward(x, x_img, w1, b1, w2, b2, w3, b3)
    # ... and a forced 2-strip run to exercise the row-strip grid + halo path.
    out_b = sam_forward(x, x_img, w1, b1, w2, b2, w3, b3, strip_rows=8)
    jax.block_until_ready((out_a, out_b))

    for x1_out, img_out in (out_a, out_b):
        np.testing.assert_allclose(np.asarray(x1_out), np.asarray(ref_x1),
                                   rtol=1e-4, atol=1e-4)
        np.testing.assert_allclose(np.asarray(img_out), np.asarray(ref_img),
                                   rtol=1e-4, atol=1e-4)
    print("KERNEL_OK")
</pallas_src>

<mosaic_0001>
module attributes {stable_mosaic.version = 11 : i64} {
  func.func @kernel(%arg0: i32, %arg1: i32, %arg2: memref<1x4x256xf32, #tpu.memory_space<vmem>>, %arg3: memref<1x1x4x64xf32, #tpu.memory_space<vmem>>, %arg4: memref<1x3x256xf32, #tpu.memory_space<vmem>>, %arg5: memref<1x1x3x32xf32, #tpu.memory_space<vmem>>, %arg6: memref<2x288xf32, #tpu.memory_space<vmem>>, %arg7: memref<7x36xf32, #tpu.memory_space<vmem>>, %arg8: memref<7x1xf32, #tpu.memory_space<vmem>>, %arg9: memref<4x27xf32, #tpu.memory_space<vmem>>, %arg10: memref<4x1xf32, #tpu.memory_space<vmem>>, %arg11: memref<1x4x256xf32, #tpu.memory_space<vmem>>, %arg12: memref<1x3x256xf32, #tpu.memory_space<vmem>>, %arg13: memref<4x576xf32, #tpu.memory_space<vmem>>, %arg14: memref<3x544xf32, #tpu.memory_space<vmem>>) attributes {dimension_semantics = [#tpu.dimension_semantics<parallel>, #tpu.dimension_semantics<parallel>], iteration_bounds = array<i64: 2, 1>, scalar_prefetch = 0 : i64, scratch_operands = 2 : i64, tpu.core_type = #tpu.core_type<tc>, window_params = [{transform_indices = @transform_0, window_bounds = array<i64: 1, 4, 256>}, {transform_indices = @transform_1, window_bounds = array<i64: 1, 1, 4, 64>}, {transform_indices = @transform_2, window_bounds = array<i64: 1, 3, 256>}, {transform_indices = @transform_3, window_bounds = array<i64: 1, 1, 3, 32>}, {pipeline_mode = #tpu.pipeline_mode<synchronous>, transform_indices = @transform_4, window_bounds = array<i64: 2, 288>}, {pipeline_mode = #tpu.pipeline_mode<synchronous>, transform_indices = @transform_5, window_bounds = array<i64: 7, 36>}, {pipeline_mode = #tpu.pipeline_mode<synchronous>, transform_indices = @transform_6, window_bounds = array<i64: 7, 1>}, {pipeline_mode = #tpu.pipeline_mode<synchronous>, transform_indices = @transform_7, window_bounds = array<i64: 4, 27>}, {pipeline_mode = #tpu.pipeline_mode<synchronous>, transform_indices = @transform_8, window_bounds = array<i64: 4, 1>}, {transform_indices = @transform_9, window_bounds = array<i64: 1, 4, 256>}, {transform_indices = @transform_10, window_bounds = array<i64: 1, 3, 256>}]} {
    %c0 = arith.constant 0 : index
    %c0_0 = arith.constant 0 : index
    %0 = vector.load %arg6[%c0, %c0_0] : memref<2x288xf32, #tpu.memory_space<vmem>>, vector<1x288xf32>
    %c1 = arith.constant 1 : index
    %c0_1 = arith.constant 0 : index
    %1 = vector.load %arg6[%c1, %c0_1] : memref<2x288xf32, #tpu.memory_space<vmem>>, vector<1x288xf32>
    %cst = arith.constant 0.000000e+00 : f32
    %2 = vector.broadcast %cst : f32 to vector<4x1xf32>
    %c0_2 = arith.constant 0 : index
    %c127 = arith.constant 127 : index
    %3 = vector.load %arg13[%c0_2, %c127] : memref<4x576xf32, #tpu.memory_space<vmem>>, vector<4x1xf32>
    tpu.vector_store %arg13[%c0_2, %c127], %2 {strides = array<i32>} : memref<4x576xf32, #tpu.memory_space<vmem>>, vector<4x1xf32>,
    %c0_3 = arith.constant 0 : index
    %c448 = arith.constant 448 : index
    %4 = vector.load %arg13[%c0_3, %c448] : memref<4x576xf32, #tpu.memory_space<vmem>>, vector<4x1xf32>
    tpu.vector_store %arg13[%c0_3, %c448], %2 {strides = array<i32>} : memref<4x576xf32, #tpu.memory_space<vmem>>, vector<4x1xf32>,
    %c0_4 = arith.constant 0 : index
    %c0_5 = arith.constant 0 : index
    %c0_6 = arith.constant 0 : index
    %c0_7 = arith.constant 0 : index
    %5 = vector.load %arg3[%c0_4, %c0_5, %c0_6, %c0_7] : memref<1x1x4x64xf32, #tpu.memory_space<vmem>>, vector<1x1x4x64xf32>
    %6 = vector.shape_cast %5 : vector<1x1x4x64xf32> to vector<4x64xf32>
    %7 = vector.extract_strided_slice %6 {offsets = [0, 0], sizes = [4, 32], strides = [1, 1]} : vector<4x64xf32> to vector<4x32xf32>
    %c0_8 = arith.constant 0 : index
    %c128 = arith.constant 128 : index
    %8 = vector.load %arg13[%c0_8, %c128] : memref<4x576xf32, #tpu.memory_space<vmem>>, vector<4x32xf32>
    tpu.vector_store %arg13[%c0_8, %c128], %7 {strides = array<i32>} : memref<4x576xf32, #tpu.memory_space<vmem>>, vector<4x32xf32>,
    %c0_9 = arith.constant 0 : index
    %c0_10 = arith.constant 0 : index
    %c0_11 = arith.constant 0 : index
    %9 = vector.load %arg2[%c0_9, %c0_10, %c0_11] : memref<1x4x256xf32, #tpu.memory_space<vmem>>, vector<1x4x256xf32>
    %10 = vector.shape_cast %9 : vector<1x4x256xf32> to vector<4x256xf32>
    %c0_12 = arith.constant 0 : index
    %c160 = arith.constant 160 : index
    %11 = vector.load %arg13[%c0_12, %c160] : memref<4x576xf32, #tpu.memory_space<vmem>>, vector<4x256xf32>
    tpu.vector_store %arg13[%c0_12, %c160], %10 {strides = array<i32>} : memref<4x576xf32, #tpu.memory_space<vmem>>, vector<4x256xf32>,
    %12 = vector.extract_strided_slice %6 {offsets = [0, 32], sizes = [4, 32], strides = [1, 1]} : vector<4x64xf32> to vector<4x32xf32>
    %c0_13 = arith.constant 0 : index
    %c416 = arith.constant 416 : index
    %13 = vector.load %arg13[%c0_13, %c416] : memref<4x576xf32, #tpu.memory_space<vmem>>, vector<4x32xf32>
    tpu.vector_store %arg13[%c0_13, %c416], %12 {strides = array<i32>} : memref<4x576xf32, #tpu.memory_space<vmem>>, vector<4x32xf32>,
    %c0_14 = arith.constant 0 : index
    %c127_15 = arith.constant 127 : index
    %14 = vector.load %arg13[%c0_14, %c127_15] : memref<4x576xf32, #tpu.memory_space<vmem>>, vector<4x288xf32>
    %15 = vector.broadcast %0 : vector<1x288xf32> to vector<4x288xf32>
    %16 = arith.mulf %14, %15 : vector<4x288xf32>
    %c0_16 = arith.constant 0 : index
    %c128_17 = arith.constant 128 : index
    %17 = vector.load %arg13[%c0_16, %c128_17] : memref<4x576xf32, #tpu.memory_space<vmem>>, vector<4x288xf32>
    %c0_18 = arith.constant 0 : index
    %c129 = arith.constant 129 : index
    %18 = vector.load %arg13[%c0_18, %c129] : memref<4x576xf32, #tpu.memory_space<vmem>>, vector<4x288xf32>
    %19 = vector.broadcast %1 : vector<1x288xf32> to vector<4x288xf32>
    %20 = arith.mulf %18, %19 : vector<4x288xf32>
    %c0_19 = arith.constant 0 : index
    %c143 = arith.constant 143 : index
    %21 = vector.load %arg13[%c0_19, %c143] : memref<4x576xf32, #tpu.memory_space<vmem>>, vector<4x288xf32>
    %22 = vector.broadcast %0 : vector<1x288xf32> to vector<4x288xf32>
    %23 = arith.mulf %21, %22 : vector<4x288xf32>
    %c0_20 = arith.constant 0 : index
    %c144 = arith.constant 144 : index
    %24 = vector.load %arg13[%c0_20, %c144] : memref<4x576xf32, #tpu.memory_space<vmem>>, vector<4x288xf32>
    %c0_21 = arith.constant 0 : index
    %c145 = arith.constant 145 : index
    %25 = vector.load %arg13[%c0_21, %c145] : memref<4x576xf32, #tpu.memory_space<vmem>>, vector<4x288xf32>
    %26 = vector.broadcast %1 : vector<1x288xf32> to vector<4x288xf32>
    %27 = arith.mulf %25, %26 : vector<4x288xf32>
    %c0_22 = arith.constant 0 : index
    %c159 = arith.constant 159 : index
    %28 = vector.load %arg13[%c0_22, %c159] : memref<4x576xf32, #tpu.memory_space<vmem>>, vector<4x288xf32>
    %29 = vector.broadcast %0 : vector<1x288xf32> to vector<4x288xf32>
    %30 = arith.mulf %28, %29 : vector<4x288xf32>
    %c0_23 = arith.constant 0 : index
    %c160_24 = arith.constant 160 : index
    %31 = vector.load %arg13[%c0_23, %c160_24] : memref<4x576xf32, #tpu.memory_space<vmem>>, vector<4x288xf32>
    %c0_25 = arith.constant 0 : index
    %c161 = arith.constant 161 : index
    %32 = vector.load %arg13[%c0_25, %c161] : memref<4x576xf32, #tpu.memory_space<vmem>>, vector<4x288xf32>
    %33 = vector.broadcast %1 : vector<1x288xf32> to vector<4x288xf32>
    %34 = arith.mulf %32, %33 : vector<4x288xf32>
    %35 = tpu.concatenate %16, %17, %20, %23, %24, %27, %30, %31, %34 in 0 : vector<4x288xf32>, vector<4x288xf32>, vector<4x288xf32>, vector<4x288xf32>, vector<4x288xf32>, vector<4x288xf32>, vector<4x288xf32>, vector<4x288xf32>, vector<4x288xf32> -> vector<36x288xf32>
    %c0_26 = arith.constant 0 : index
    %c0_27 = arith.constant 0 : index
    %36 = vector.load %arg7[%c0_26, %c0_27] : memref<7x36xf32, #tpu.memory_space<vmem>>, vector<7x36xf32>
    %cst_28 = arith.constant dense<0.000000e+00> : vector<7x288xf32>
    %37 = tpu.matmul %36, %35, %cst_28 {dimension_numbers = #tpu.dot_dimension_numbers<[1], [0], [0], [1], [0, 0, 1, 1], [], []>} : vector<7x36xf32>, vector<36x288xf32>, vector<7x288xf32> -> vector<7x288xf32>
    %c0_29 = arith.constant 0 : index
    %c0_30 = arith.constant 0 : index
    %38 = vector.load %arg8[%c0_29, %c0_30] : memref<7x1xf32, #tpu.memory_space<vmem>>, vector<7x1xf32>
    %39 = vector.broadcast %38 : vector<7x1xf32> to vector<7x288xf32>
    %40 = arith.addf %37, %39 : vector<7x288xf32>
    %41 = vector.extract_strided_slice %40 {offsets = [0, 16], sizes = [4, 256], strides = [1, 1]} : vector<7x288xf32> to vector<4x256xf32>
    %c0_31 = arith.constant 0 : index
    %c0_32 = arith.constant 0 : index
    %c0_33 = arith.constant 0 : index
    %c0_34 = arith.constant 0 : index
    %42 = vector.load %arg5[%c0_31, %c0_32, %c0_33, %c0_34] : memref<1x1x3x32xf32, #tpu.memory_space<vmem>>, vector<1x1x3x32xf32>
    %43 = vector.shape_cast %42 : vector<1x1x3x32xf32> to vector<3x32xf32>
    %44 = vector.extract_strided_slice %43 {offsets = [0, 0], sizes = [3, 16], strides = [1, 1]} : vector<3x32xf32> to vector<3x16xf32>
    %c0_35 = arith.constant 0 : index
    %c0_36 = arith.constant 0 : index
    %c0_37 = arith.constant 0 : index
    %45 = vector.load %arg4[%c0_35, %c0_36, %c0_37] : memref<1x3x256xf32, #tpu.memory_space<vmem>>, vector<1x3x256xf32>
    %46 = vector.shape_cast %45 : vector<1x3x256xf32> to vector<3x256xf32>
    %47 = vector.extract_strided_slice %43 {offsets = [0, 16], sizes = [3, 16], strides = [1, 1]} : vector<3x32xf32> to vector<3x16xf32>
    %48 = tpu.concatenate %44, %46, %47 in 1 : vector<3x16xf32>, vector<3x256xf32>, vector<3x16xf32> -> vector<3x288xf32>
    %49 = vector.extract_strided_slice %40 {offsets = [4, 0], sizes = [3, 288], strides = [1, 1]} : vector<7x288xf32> to vector<3x288xf32>
    %50 = arith.addf %49, %48 : vector<3x288xf32>
    %51 = vector.extract_strided_slice %50 {offsets = [0, 16], sizes = [3, 256], strides = [1, 1]} : vector<3x288xf32> to vector<3x256xf32>
    %c0_38 = arith.constant 0 : index
    %c0_39 = arith.constant 0 : index
    %c0_40 = arith.constant 0 : index
    %52 = vector.load %arg12[%c0_38, %c0_39, %c0_40] : memref<1x3x256xf32, #tpu.memory_space<vmem>>, vector<1x3x256xf32>
    %53 = vector.shape_cast %52 : vector<1x3x256xf32> to vector<3x256xf32>
    %54 = vector.shape_cast %51 : vector<3x256xf32> to vector<1x3x256xf32>
    tpu.vector_store %arg12[%c0_38, %c0_39, %c0_40], %54 {strides = array<i32>} : memref<1x3x256xf32, #tpu.memory_space<vmem>>, vector<1x3x256xf32>,
    %c0_i32 = arith.constant 0 : i32
    %55 = arith.cmpi sgt, %arg1, %c0_i32 : i32
    %56 = arith.extui %55 : i1 to i32
    %57 = arith.sitofp %56 : i32 to f32
    %c0_i32_41 = arith.constant 0 : i32
    %58 = arith.cmpi slt, %arg1, %c0_i32_41 : i32
    %59 = arith.extui %58 : i1 to i32
    %60 = arith.sitofp %59 : i32 to f32
    %cst_42 = arith.constant 1.000000e+00 : f32
    %61 = vector.broadcast %cst_42 : f32 to vector<1x16xf32>
    %62 = vector.broadcast %57 : f32 to vector<1x16xf32>
    %63 = arith.mulf %61, %62 : vector<1x16xf32>
    %cst_43 = arith.constant 1.000000e+00 : f32
    %64 = vector.broadcast %cst_43 : f32 to vector<1x256xf32>
    %cst_44 = arith.constant 1.000000e+00 : f32
    %65 = vector.broadcast %cst_44 : f32 to vector<1x16xf32>
    %66 = vector.broadcast %60 : f32 to vector<1x16xf32>
    %67 = arith.mulf %65, %66 : vector<1x16xf32>
    %68 = tpu.concatenate %63, %64, %67 in 1 : vector<1x16xf32>, vector<1x256xf32>, vector<1x16xf32> -> vector<1x288xf32>
    %cst_45 = arith.constant 0.000000e+00 : f32
    %69 = vector.broadcast %cst_45 : f32 to vector<3x1xf32>
    %c0_46 = arith.constant 0 : index
    %c127_47 = arith.constant 127 : index
    %70 = vector.load %arg14[%c0_46, %c127_47] : memref<3x544xf32, #tpu.memory_space<vmem>>, vector<3x1xf32>
    tpu.vector_store %arg14[%c0_46, %c127_47], %69 {strides = array<i32>} : memref<3x544xf32, #tpu.memory_space<vmem>>, vector<3x1xf32>,
    %c0_48 = arith.constant 0 : index
    %c416_49 = arith.constant 416 : index
    %71 = vector.load %arg14[%c0_48, %c416_49] : memref<3x544xf32, #tpu.memory_space<vmem>>, vector<3x1xf32>
    tpu.vector_store %arg14[%c0_48, %c416_49], %69 {strides = array<i32>} : memref<3x544xf32, #tpu.memory_space<vmem>>, vector<3x1xf32>,
    %72 = vector.broadcast %68 : vector<1x288xf32> to vector<3x288xf32>
    %73 = arith.mulf %50, %72 : vector<3x288xf32>
    %c0_50 = arith.constant 0 : index
    %c128_51 = arith.constant 128 : index
    %74 = vector.load %arg14[%c0_50, %c128_51] : memref<3x544xf32, #tpu.memory_space<vmem>>, vector<3x288xf32>
    tpu.vector_store %arg14[%c0_50, %c128_51], %73 {strides = array<i32>} : memref<3x544xf32, #tpu.memory_space<vmem>>, vector<3x288xf32>,
    %75 = vector.extract_strided_slice %0 {offsets = [0, 0], sizes = [1, 256], strides = [1, 1]} : vector<1x288xf32> to vector<1x256xf32>
    %76 = vector.extract_strided_slice %1 {offsets = [0, 0], sizes = [1, 256], strides = [1, 1]} : vector<1x288xf32> to vector<1x256xf32>
    %c0_52 = arith.constant 0 : index
    %c127_53 = arith.constant 127 : index
    %77 = vector.load %arg14[%c0_52, %c127_53] : memref<3x544xf32, #tpu.memory_space<vmem>>, vector<3x256xf32>
    %78 = vector.broadcast %75 : vector<1x256xf32> to vector<3x256xf32>
    %79 = arith.mulf %77, %78 : vector<3x256xf32>
    %c0_54 = arith.constant 0 : index
    %c128_55 = arith.constant 128 : index
    %80 = vector.load %arg14[%c0_54, %c128_55] : memref<3x544xf32, #tpu.memory_space<vmem>>, vector<3x256xf32>
    %c0_56 = arith.constant 0 : index
    %c129_57 = arith.constant 129 : index
    %81 = vector.load %arg14[%c0_56, %c129_57] : memref<3x544xf32, #tpu.memory_space<vmem>>, vector<3x256xf32>
    %82 = vector.broadcast %76 : vector<1x256xf32> to vector<3x256xf32>
    %83 = arith.mulf %81, %82 : vector<3x256xf32>
    %c0_58 = arith.constant 0 : index
    %c143_59 = arith.constant 143 : index
    %84 = vector.load %arg14[%c0_58, %c143_59] : memref<3x544xf32, #tpu.memory_space<vmem>>, vector<3x256xf32>
    %85 = vector.broadcast %75 : vector<1x256xf32> to vector<3x256xf32>
    %86 = arith.mulf %84, %85 : vector<3x256xf32>
    %c0_60 = arith.constant 0 : index
    %c144_61 = arith.constant 144 : index
    %87 = vector.load %arg14[%c0_60, %c144_61] : memref<3x544xf32, #tpu.memory_space<vmem>>, vector<3x256xf32>
    %c0_62 = arith.constant 0 : index
    %c145_63 = arith.constant 145 : index
    %88 = vector.load %arg14[%c0_62, %c145_63] : memref<3x544xf32, #tpu.memory_space<vmem>>, vector<3x256xf32>
    %89 = vector.broadcast %76 : vector<1x256xf32> to vector<3x256xf32>
    %90 = arith.mulf %88, %89 : vector<3x256xf32>
    %c0_64 = arith.constant 0 : index
    %c159_65 = arith.constant 159 : index
    %91 = vector.load %arg14[%c0_64, %c159_65] : memref<3x544xf32, #tpu.memory_space<vmem>>, vector<3x256xf32>
    %92 = vector.broadcast %75 : vector<1x256xf32> to vector<3x256xf32>
    %93 = arith.mulf %91, %92 : vector<3x256xf32>
    %c0_66 = arith.constant 0 : index
    %c160_67 = arith.constant 160 : index
    %94 = vector.load %arg14[%c0_66, %c160_67] : memref<3x544xf32, #tpu.memory_space<vmem>>, vector<3x256xf32>
    %c0_68 = arith.constant 0 : index
    %c161_69 = arith.constant 161 : index
    %95 = vector.load %arg14[%c0_68, %c161_69] : memref<3x544xf32, #tpu.memory_space<vmem>>, vector<3x256xf32>
    %96 = vector.broadcast %76 : vector<1x256xf32> to vector<3x256xf32>
    %97 = arith.mulf %95, %96 : vector<3x256xf32>
    %98 = tpu.concatenate %79, %80, %83, %86, %87, %90, %93, %94, %97 in 0 : vector<3x256xf32>, vector<3x256xf32>, vector<3x256xf32>, vector<3x256xf32>, vector<3x256xf32>, vector<3x256xf32>, vector<3x256xf32>, vector<3x256xf32>, vector<3x256xf32> -> vector<27x256xf32>
    %c0_70 = arith.constant 0 : index
    %c0_71 = arith.constant 0 : index
    %99 = vector.load %arg9[%c0_70, %c0_71] : memref<4x27xf32, #tpu.memory_space<vmem>>, vector<4x27xf32>
    %cst_72 = arith.constant dense<0.000000e+00> : vector<4x256xf32>
    %100 = tpu.matmul %99, %98, %cst_72 {dimension_numbers = #tpu.dot_dimension_numbers<[1], [0], [0], [1], [0, 0, 1, 1], [], []>} : vector<4x27xf32>, vector<27x256xf32>, vector<4x256xf32> -> vector<4x256xf32>
    %c0_73 = arith.constant 0 : index
    %c0_74 = arith.constant 0 : index
    %101 = vector.load %arg10[%c0_73, %c0_74] : memref<4x1xf32, #tpu.memory_space<vmem>>, vector<4x1xf32>
    %102 = vector.broadcast %101 : vector<4x1xf32> to vector<4x256xf32>
    %103 = arith.addf %100, %102 : vector<4x256xf32>
    %104 = arith.negf %103 : vector<4x256xf32>
    %105 = math.exp %104 : vector<4x256xf32>
    %cst_75 = arith.constant 1.000000e+00 : f32
    %106 = vector.broadcast %cst_75 : f32 to vector<4x256xf32>
    %107 = arith.addf %106, %105 : vector<4x256xf32>
    %108 = arith.divf %106, %107 : vector<4x256xf32>
    %109 = arith.mulf %41, %108 : vector<4x256xf32>
    %c0_76 = arith.constant 0 : index
    %c0_77 = arith.constant 0 : index
    %c0_78 = arith.constant 0 : index
    %110 = vector.load %arg2[%c0_76, %c0_77, %c0_78] : memref<1x4x256xf32, #tpu.memory_space<vmem>>, vector<1x4x256xf32>
    %111 = vector.shape_cast %110 : vector<1x4x256xf32> to vector<4x256xf32>
    %112 = arith.addf %109, %111 : vector<4x256xf32>
    %c0_79 = arith.constant 0 : index
    %c0_80 = arith.constant 0 : index
    %c0_81 = arith.constant 0 : index
    %113 = vector.load %arg11[%c0_79, %c0_80, %c0_81] : memref<1x4x256xf32, #tpu.memory_space<vmem>>, vector<1x4x256xf32>
    %114 = vector.shape_cast %113 : vector<1x4x256xf32> to vector<4x256xf32>
    %115 = vector.shape_cast %112 : vector<4x256xf32> to vector<1x4x256xf32>
    tpu.vector_store %arg11[%c0_79, %c0_80, %c0_81], %115 {strides = array<i32>} : memref<1x4x256xf32, #tpu.memory_space<vmem>>, vector<1x4x256xf32>,
    return
  }
  func.func @transform_0(%arg0: i32, %arg1: i32) -> (i32, i32, i32) {
    %c0_i32 = arith.constant 0 : i32
    %c0_i32_0 = arith.constant 0 : i32
    return %arg0, %c0_i32, %arg1 : i32, i32, i32
  }
  func.func @transform_1(%arg0: i32, %arg1: i32) -> (i32, i32, i32, i32) {
    %c0_i32 = arith.constant 0 : i32
    %c0_i32_0 = arith.constant 0 : i32
    %c0_i32_1 = arith.constant 0 : i32
    return %arg0, %arg1, %c0_i32, %c0_i32_0 : i32, i32, i32, i32
  }
  func.func @transform_2(%arg0: i32, %arg1: i32) -> (i32, i32, i32) {
    %c0_i32 = arith.constant 0 : i32
    %c0_i32_0 = arith.constant 0 : i32
    return %arg0, %c0_i32, %arg1 : i32, i32, i32
  }
  func.func @transform_3(%arg0: i32, %arg1: i32) -> (i32, i32, i32, i32) {
    %c0_i32 = arith.constant 0 : i32
    %c0_i32_0 = arith.constant 0 : i32
    %c0_i32_1 = arith.constant 0 : i32
    return %arg0, %arg1, %c0_i32, %c0_i32_0 : i32, i32, i32, i32
  }
  func.func @transform_4(%arg0: i32, %arg1: i32) -> (i32, i32) {
    %c0_i32 = arith.constant 0 : i32
    %c0_i32_0 = arith.constant 0 : i32
    %c0_i32_1 = arith.constant 0 : i32
    return %c0_i32, %c0_i32_0 : i32, i32
  }
  func.func @transform_5(%arg0: i32, %arg1: i32) -> (i32, i32) {
    %c0_i32 = arith.constant 0 : i32
    %c0_i32_0 = arith.constant 0 : i32
    %c0_i32_1 = arith.constant 0 : i32
    return %c0_i32, %c0_i32_0 : i32, i32
  }
  func.func @transform_6(%arg0: i32, %arg1: i32) -> (i32, i32) {
    %c0_i32 = arith.constant 0 : i32
    %c0_i32_0 = arith.constant 0 : i32
    %c0_i32_1 = arith.constant 0 : i32
    return %c0_i32, %c0_i32_0 : i32, i32
  }
  func.func @transform_7(%arg0: i32, %arg1: i32) -> (i32, i32) {
    %c0_i32 = arith.constant 0 : i32
    %c0_i32_0 = arith.constant 0 : i32
    %c0_i32_1 = arith.constant 0 : i32
    return %c0_i32, %c0_i32_0 : i32, i32
  }
  func.func @transform_8(%arg0: i32, %arg1: i32) -> (i32, i32) {
    %c0_i32 = arith.constant 0 : i32
    %c0_i32_0 = arith.constant 0 : i32
    %c0_i32_1 = arith.constant 0 : i32
    return %c0_i32, %c0_i32_0 : i32, i32
  }
  func.func @transform_9(%arg0: i32, %arg1: i32) -> (i32, i32, i32) {
    %c0_i32 = arith.constant 0 : i32
    %c0_i32_0 = arith.constant 0 : i32
    return %arg0, %c0_i32, %arg1 : i32, i32, i32
  }
  func.func @transform_10(%arg0: i32, %arg1: i32) -> (i32, i32, i32) {
    %c0_i32 = arith.constant 0 : i32
    %c0_i32_0 = arith.constant 0 : i32
    return %arg0, %c0_i32, %arg1 : i32, i32, i32
  }
}

</mosaic_0001>

<llo_original>
// kernel: sam_forward.1
$region0: #{sam_forward.1}
  #allocation0 [shape = 'u32[]', space=smem, size = 0x4, offset = 0x4, fixed_abs, tag = 'smem constant byte address 0x4 - core index']
  #allocation1 [shape = 'u32[144,128]{1,0:T(1,128)}', space=vmem, size = 0x12000, scoped, tag = 'internal scratch']
  #allocation2 [shape = 'f32[4,576]{1,0:T(4,128)}', space=vmem, size = 0x2800, scoped, tag = 'scratch operand']
  #allocation3 [shape = 'f32[3,544]{1,0:T(4,128)}', space=vmem, size = 0x2800, scoped, tag = 'scratch operand']
  %s0 = inlined_call_operand.vmem [shape: f32[2,4,256], index: 0, kind: input, shape index: {}]
  %s1 = inlined_call_operand.vmem [shape: f32[2,1,4,64], index: 1, kind: input, shape index: {}]
  %s2 = inlined_call_operand.vmem [shape: f32[2,3,256], index: 2, kind: input, shape index: {}]
  %s3 = inlined_call_operand.vmem [shape: f32[2,1,3,32], index: 3, kind: input, shape index: {}]
  %s4 = inlined_call_operand.vmem [shape: f32[2,288], index: 4, kind: input, shape index: {}]
  %s5 = inlined_call_operand.vmem [shape: f32[7,36], index: 5, kind: input, shape index: {}]
  %s6 = inlined_call_operand.vmem [shape: f32[7,1], index: 6, kind: input, shape index: {}]
  %s7 = inlined_call_operand.vmem [shape: f32[4,27], index: 7, kind: input, shape index: {}]
  %s8 = inlined_call_operand.vmem [shape: f32[4,1], index: 8, kind: input, shape index: {}]
  %s9 = inlined_call_operand.vmem [shape: f32[2,4,256], index: 9, kind: output, shape index: {0}]
  %s10 = inlined_call_operand.vmem [shape: f32[2,3,256], index: 10, kind: output, shape index: {1}]
  %11 = xla_tuple %s9, %s10
  %s12 = sld [smem:[#allocation0]]
  $region77: #{sam_forward.1} parent=0
    _
  %s14 = ssub.s32 1, %s12
  %s15 = scalar_select 0, %s14, %s12
  loop: start=0, step=1, limit=4
  $region2: #{sam_forward.1} parent=0 // loop_pre_header
    _
  $region3: #{sam_forward.1} parent=0 // loop_header
    %s17 = sphi 0, %s21
    %p18 = scmp.ge.s32.totalorder %s17, 4
    %s24 = sphi 0, %s36
    %s25 = sphi 0, %s32
    %s26 = sphi 0, %s24
    %s27 = sphi 0, %s25
    %s28 = sphi 0, %s26
    %s29 = sphi 0, %s27
    %s41 = sphi 0, %s43
    %s44 = sphi 0, %s41
    %s45 = sphi 0, %s44
    %s61 = sphi 0, %s45
    %s69 = sphi 0, %s71
    %s72 = sphi 0, %s69
    %s73 = sphi 0, %s72
    %s89 = sphi 0, %s73
    %s97 = sphi 0, %s99
    %s100 = sphi 0, %s97
    %s101 = sphi 0, %s100
    %s117 = sphi 0, %s101
    %s125 = sphi 0, %s127
    %s128 = sphi 0, %s125
    %s129 = sphi 0, %s128
    %s145 = sphi 0, %s129
    %s149 = sphi 0, %s149
    %s151 = sphi 0, %s149
    %s152 = sphi 0, %s151
    %s166 = sphi 0, %s152
    %s170 = sphi 0, %s170
    %s172 = sphi 0, %s170
    %s173 = sphi 0, %s172
    %s187 = sphi 0, %s173
    %s191 = sphi 0, %s191
    %s193 = sphi 0, %s191
    %s194 = sphi 0, %s193
    %s208 = sphi 0, %s194
    %s212 = sphi 0, %s212
    %s214 = sphi 0, %s212
    %s215 = sphi 0, %s214
    %s229 = sphi 0, %s215
    %s233 = sphi 0, %s233
    %s235 = sphi 0, %s233
    %s236 = sphi 0, %s235
    %s250 = sphi 0, %s236
    %s258 = sphi 0, %s260
    %s261 = sphi 0, %s258
    %s262 = sphi 0, %s261
    %s278 = sphi 0, %s262
    %s286 = sphi 0, %s288
    %s289 = sphi 0, %s286
    %s290 = sphi 0, %s289
    %s306 = sphi 0, %s290
  $region4: #{sam_forward.1} parent=0 // loop_header_branch
    %20 = sbr.rel (%p18) target = $region8
  $region5: #{sam_forward.1} parent=0 // loop_body
    %s22 = ssub.s32 %s17, 1
    %s23 = ssub.s32 %s17, 2
    %s30 = sadd.s32 1, %s25
    %p31 = scmp.ge.s32.totalorder %s30, 1
    %s32 = scalar_select %p31, 0, %s30
    %s33 = sadd.s32 1, %s24
    %s34 = scalar_select %p31, %s33, %s24
    %p35 = scmp.ge.s32.totalorder %s34, 2
    %s36 = scalar_select %p35, 0, %s34
    %s37 = ssub.s32 %s24, %s36
    %s38 = ssub.s32 %s25, %s32
    %s39 = sor.u32 %s37, %s38
    %p40 = scmp.eq.s32.totalorder %s39, 0
    %s42 = sadd.s32 %s41, 1
    %s43 = scalar_select %p40, %s41, %s42
    %p46 = pneg %p40
    %p47 = scmp.eq.s32.totalorder %s17, 1
    %p48 = por %p46, %p47
    %p49 = scmp.ne.s32.totalorder %s41, %s44
    %p50 = scmp.eq.s32.totalorder %s17, 0
    %p51 = por %p49, %p50
    %p52 = scmp.ne.s32.totalorder %s41, %s44
    %p53 = scmp.eq.s32.totalorder %s22, 1
    %p54 = por %p52, %p53
    %p55 = scmp.ne.s32.totalorder %s44, %s45
    %p56 = scmp.eq.s32.totalorder %s22, 0
    %p57 = por %p55, %p56
    %p58 = scmp.ne.s32.totalorder %s44, %s45
    %p59 = scmp.eq.s32.totalorder %s23, 1
    %p60 = por %p58, %p59
    %p62 = scmp.ne.s32.totalorder %s45, %s61
    %p63 = scmp.eq.s32.totalorder %s23, 0
    %p64 = por %p62, %p63
    %s65 = ssub.s32 %s24, %s36
    %s66 = ssub.s32 %s25, %s32
    %s67 = sor.u32 %s65, %s66
    %p68 = scmp.eq.s32.totalorder %s67, 0
    %s70 = sadd.s32 %s69, 1
    %s71 = scalar_select %p68, %s69, %s70
    %p74 = pneg %p68
    %p75 = scmp.eq.s32.totalorder %s17, 1
    %p76 = por %p74, %p75
    %p77 = scmp.ne.s32.totalorder %s69, %s72
    %p78 = scmp.eq.s32.totalorder %s17, 0
    %p79 = por %p77, %p78
    %p80 = scmp.ne.s32.totalorder %s69, %s72
    %p81 = scmp.eq.s32.totalorder %s22, 1
    %p82 = por %p80, %p81
    %p83 = scmp.ne.s32.totalorder %s72, %s73
    %p84 = scmp.eq.s32.totalorder %s22, 0
    %p85 = por %p83, %p84
    %p86 = scmp.ne.s32.totalorder %s72, %s73
    %p87 = scmp.eq.s32.totalorder %s23, 1
    %p88 = por %p86, %p87
    %p90 = scmp.ne.s32.totalorder %s73, %s89
    %p91 = scmp.eq.s32.totalorder %s23, 0
    %p92 = por %p90, %p91
    %s93 = ssub.s32 %s24, %s36
    %s94 = ssub.s32 %s25, %s32
    %s95 = sor.u32 %s93, %s94
    %p96 = scmp.eq.s32.totalorder %s95, 0
    %s98 = sadd.s32 %s97, 1
    %s99 = scalar_select %p96, %s97, %s98
    %p102 = pneg %p96
    %p103 = scmp.eq.s32.totalorder %s17, 1
    %p104 = por %p102, %p103
    %p105 = scmp.ne.s32.totalorder %s97, %s100
    %p106 = scmp.eq.s32.totalorder %s17, 0
    %p107 = por %p105, %p106
    %p108 = scmp.ne.s32.totalorder %s97, %s100
    %p109 = scmp.eq.s32.totalorder %s22, 1
    %p110 = por %p108, %p109
    %p111 = scmp.ne.s32.totalorder %s100, %s101
    %p112 = scmp.eq.s32.totalorder %s22, 0
    %p113 = por %p111, %p112
    %p114 = scmp.ne.s32.totalorder %s100, %s101
    %p115 = scmp.eq.s32.totalorder %s23, 1
    %p116 = por %p114, %p115
    %p118 = scmp.ne.s32.totalorder %s101, %s117
    %p119 = scmp.eq.s32.totalorder %s23, 0
    %p120 = por %p118, %p119
    %s121 = ssub.s32 %s24, %s36
    %s122 = ssub.s32 %s25, %s32
    %s123 = sor.u32 %s121, %s122
    %p124 = scmp.eq.s32.totalorder %s123, 0
    %s126 = sadd.s32 %s125, 1
    %s127 = scalar_select %p124, %s125, %s126
    %p130 = pneg %p124
    %p131 = scmp.eq.s32.totalorder %s17, 1
    %p132 = por %p130, %p131
    %p133 = scmp.ne.s32.totalorder %s125, %s128
    %p134 = scmp.eq.s32.totalorder %s17, 0
    %p135 = por %p133, %p134
    %p136 = scmp.ne.s32.totalorder %s125, %s128
    %p137 = scmp.eq.s32.totalorder %s22, 1
    %p138 = por %p136, %p137
    %p139 = scmp.ne.s32.totalorder %s128, %s129
    %p140 = scmp.eq.s32.totalorder %s22, 0
    %p141 = por %p139, %p140
    %p142 = scmp.ne.s32.totalorder %s128, %s129
    %p143 = scmp.eq.s32.totalorder %s23, 1
    %p144 = por %p142, %p143
    %p146 = scmp.ne.s32.totalorder %s129, %s145
    %p147 = scmp.eq.s32.totalorder %s23, 0
    %p148 = por %p146, %p147
    %s150 = sadd.s32 %s149, 1
    %p153 = scmp.eq.s32.totalorder %s17, 1
    %p154 = scmp.ne.s32.totalorder %s149, %s151
    %p155 = scmp.eq.s32.totalorder %s17, 0
    %p156 = por %p154, %p155
    %p157 = scmp.ne.s32.totalorder %s149, %s151
    %p158 = scmp.eq.s32.totalorder %s22, 1
    %p159 = por %p157, %p158
    %p160 = scmp.ne.s32.totalorder %s151, %s152
    %p161 = scmp.eq.s32.totalorder %s22, 0
    %p162 = por %p160, %p161
    %p163 = scmp.ne.s32.totalorder %s151, %s152
    %p164 = scmp.eq.s32.totalorder %s23, 1
    %p165 = por %p163, %p164
    %p167 = scmp.ne.s32.totalorder %s152, %s166
    %p168 = scmp.eq.s32.totalorder %s23, 0
    %p169 = por %p167, %p168
    %s171 = sadd.s32 %s170, 1
    %p174 = scmp.eq.s32.totalorder %s17, 1
    %p175 = scmp.ne.s32.totalorder %s170, %s172
    %p176 = scmp.eq.s32.totalorder %s17, 0
    %p177 = por %p175, %p176
    %p178 = scmp.ne.s32.totalorder %s170, %s172
    %p179 = scmp.eq.s32.totalorder %s22, 1
    %p180 = por %p178, %p179
    %p181 = scmp.ne.s32.totalorder %s172, %s173
    %p182 = scmp.eq.s32.totalorder %s22, 0
    %p183 = por %p181, %p182
    %p184 = scmp.ne.s32.totalorder %s172, %s173
    %p185 = scmp.eq.s32.totalorder %s23, 1
    %p186 = por %p184, %p185
    %p188 = scmp.ne.s32.totalorder %s173, %s187
    %p189 = scmp.eq.s32.totalorder %s23, 0
    %p190 = por %p188, %p189
    %s192 = sadd.s32 %s191, 1
    %p195 = scmp.eq.s32.totalorder %s17, 1
    %p196 = scmp.ne.s32.totalorder %s191, %s193
    %p197 = scmp.eq.s32.totalorder %s17, 0
    %p198 = por %p196, %p197
    %p199 = scmp.ne.s32.totalorder %s191, %s193
    %p200 = scmp.eq.s32.totalorder %s22, 1
    %p201 = por %p199, %p200
    %p202 = scmp.ne.s32.totalorder %s193, %s194
    %p203 = scmp.eq.s32.totalorder %s22, 0
    %p204 = por %p202, %p203
    %p205 = scmp.ne.s32.totalorder %s193, %s194
    %p206 = scmp.eq.s32.totalorder %s23, 1
    %p207 = por %p205, %p206
    %p209 = scmp.ne.s32.totalorder %s194, %s208
    %p210 = scmp.eq.s32.totalorder %s23, 0
    %p211 = por %p209, %p210
    %s213 = sadd.s32 %s212, 1
    %p216 = scmp.eq.s32.totalorder %s17, 1
    %p217 = scmp.ne.s32.totalorder %s212, %s214
    %p218 = scmp.eq.s32.totalorder %s17, 0
    %p219 = por %p217, %p218
    %p220 = scmp.ne.s32.totalorder %s212, %s214
    %p221 = scmp.eq.s32.totalorder %s22, 1
    %p222 = por %p220, %p221
    %p223 = scmp.ne.s32.totalorder %s214, %s215
    %p224 = scmp.eq.s32.totalorder %s22, 0
    %p225 = por %p223, %p224
    %p226 = scmp.ne.s32.totalorder %s214, %s215
    %p227 = scmp.eq.s32.totalorder %s23, 1
    %p228 = por %p226, %p227
    %p230 = scmp.ne.s32.totalorder %s215, %s229
    %p231 = scmp.eq.s32.totalorder %s23, 0
    %p232 = por %p230, %p231
    %s234 = sadd.s32 %s233, 1
    %p237 = scmp.eq.s32.totalorder %s17, 1
    %p238 = scmp.ne.s32.totalorder %s233, %s235
    %p239 = scmp.eq.s32.totalorder %s17, 0
    %p240 = por %p238, %p239
    %p241 = scmp.ne.s32.totalorder %s233, %s235
    %p242 = scmp.eq.s32.totalorder %s22, 1
    %p243 = por %p241, %p242
    %p244 = scmp.ne.s32.totalorder %s235, %s236
    %p245 = scmp.eq.s32.totalorder %s22, 0
    %p246 = por %p244, %p245
    %p247 = scmp.ne.s32.totalorder %s235, %s236
    %p248 = scmp.eq.s32.totalorder %s23, 1
    %p249 = por %p247, %p248
    %p251 = scmp.ne.s32.totalorder %s236, %s250
    %p252 = scmp.eq.s32.totalorder %s23, 0
    %p253 = por %p251, %p252
    %s254 = ssub.s32 %s24, %s36
    %s255 = ssub.s32 %s25, %s32
    %s256 = sor.u32 %s254, %s255
    %p257 = scmp.eq.s32.totalorder %s256, 0
    %s259 = sadd.s32 %s258, 1
    %s260 = scalar_select %p257, %s258, %s259
    %p263 = pneg %p257
    %p264 = scmp.eq.s32.totalorder %s17, 1
    %p265 = por %p263, %p264
    %p266 = scmp.ne.s32.totalorder %s258, %s261
    %p267 = scmp.eq.s32.totalorder %s17, 0
    %p268 = por %p266, %p267
    %p269 = scmp.ne.s32.totalorder %s258, %s261
    %p270 = scmp.eq.s32.totalorder %s22, 1
    %p271 = por %p269, %p270
    %p272 = scmp.ne.s32.totalorder %s261, %s262
    %p273 = scmp.eq.s32.totalorder %s22, 0
    %p274 = por %p272, %p273
    %p275 = scmp.ne.s32.totalorder %s261, %s262
    %p276 = scmp.eq.s32.totalorder %s23, 1
    %p277 = por %p275, %p276
    %p279 = scmp.ne.s32.totalorder %s262, %s278
    %p280 = scmp.eq.s32.totalorder %s23, 0
    %p281 = por %p279, %p280
    %s282 = ssub.s32 %s24, %s36
    %s283 = ssub.s32 %s25, %s32
    %s284 = sor.u32 %s282, %s283
    %p285 = scmp.eq.s32.totalorder %s284, 0
    %s287 = sadd.s32 %s286, 1
    %s288 = scalar_select %p285, %s286, %s287
    %p291 = pneg %p285
    %p292 = scmp.eq.s32.totalorder %s17, 1
    %p293 = por %p291, %p292
    %p294 = scmp.ne.s32.totalorder %s286, %s289
    %p295 = scmp.eq.s32.totalorder %s17, 0
    %p296 = por %p294, %p295
    %p297 = scmp.ne.s32.totalorder %s286, %s289
    %p298 = scmp.eq.s32.totalorder %s22, 1
    %p299 = por %p297, %p298
    %p300 = scmp.ne.s32.totalorder %s289, %s290
    %p301 = scmp.eq.s32.totalorder %s22, 0
    %p302 = por %p300, %p301
    %p303 = scmp.ne.s32.totalorder %s289, %s290
    %p304 = scmp.eq.s32.totalorder %s23, 1
    %p305 = por %p303, %p304
    %p307 = scmp.ne.s32.totalorder %s290, %s306
    %p308 = scmp.eq.s32.totalorder %s23, 0
    %p309 = por %p307, %p308
    %p310 = scmp.le.s32.totalorder 1, %s17
    %p311 = scmp.lt.s32.totalorder %s17, 3
    %p312 = pnand %p310, %p311
    %p313 = pneg %p312
    // Predicated region
    $region9: #{sam_forward.1} parent=5 // pred_check
      _
    $region10: #{sam_forward.1} parent=5 // pred_check_branch
      %315 = sbr.rel (%p312) target = $region12
    $region11: #{sam_forward.1} parent=5 // pred_region
      %s316 = ssub.s32 %s17, 1
      // Predicated region
      $region13: #{sam_forward.1} parent=11 // pred_check
        %p317 = pneg %p162
      $region14: #{sam_forward.1} parent=11 // pred_check_branch
        %319 = sbr.rel (%p317) target = $region16
      $region15: #{sam_forward.1} parent=11 // pred_region
        _
      $region16: #{sam_forward.1} parent=11 // pred_fallthru
        _
      // Predicated region
      $region17: #{sam_forward.1} parent=11 // pred_check
        %p320 = pneg %p183
      $region18: #{sam_forward.1} parent=11 // pred_check_branch
        %322 = sbr.rel (%p320) target = $region20
      $region19: #{sam_forward.1} parent=11 // pred_region
        _
      $region20: #{sam_forward.1} parent=11 // pred_fallthru
        _
      // Predicated region
      $region21: #{sam_forward.1} parent=11 // pred_check
        %p323 = pneg %p204
      $region22: #{sam_forward.1} parent=11 // pred_check_branch
        %325 = sbr.rel (%p323) target = $region24
      $region23: #{sam_forward.1} parent=11 // pred_region
        _
      $region24: #{sam_forward.1} parent=11 // pred_fallthru
        _
      // Predicated region
      $region25: #{sam_forward.1} parent=11 // pred_check
        %p326 = pneg %p225
      $region26: #{sam_forward.1} parent=11 // pred_check_branch
        %328 = sbr.rel (%p326) target = $region28
      $region27: #{sam_forward.1} parent=11 // pred_region
        _
      $region28: #{sam_forward.1} parent=11 // pred_fallthru
        _
      // Predicated region
      $region29: #{sam_forward.1} parent=11 // pred_check
        %p329 = pneg %p246
      $region30: #{sam_forward.1} parent=11 // pred_check_branch
        %331 = sbr.rel (%p329) target = $region32
      $region31: #{sam_forward.1} parent=11 // pred_region
        _
      $region32: #{sam_forward.1} parent=11 // pred_fallthru
        _
    $region12: #{sam_forward.1} parent=5 // pred_fallthru
      _
    %p332 = scmp.lt.s32.totalorder %s17, 2
    // Predicated region
    $region33: #{sam_forward.1} parent=5 // pred_check
      %p333 = pneg %p332
    $region34: #{sam_forward.1} parent=5 // pred_check_branch
      %335 = sbr.rel (%p333) target = $region36
    $region35: #{sam_forward.1} parent=5 // pred_region
      // Predicated region
      $region37: #{sam_forward.1} parent=35 // pred_check
        %p336 = pneg %p51
      $region38: #{sam_forward.1} parent=35 // pred_check_branch
        %338 = sbr.rel (%p336) target = $region40
      $region39: #{sam_forward.1} parent=35 // pred_region
        %s339 = smul.u32 2, %s25
        %p340 = scmp.lt.s32.totalorder %s24, 1
        %s341 = scalar_select %p340, %s24, 1
        %p342 = scmp.lt.s32.totalorder %s339, 1
        %s343 = scalar_select %p342, %s339, 1
        %s344 = smul.addr %s341, 2
        %s345 = sadd.s32 %s343, %s344
        %s346 = smul.addr %s345, 4
        %s347 = scalar_lea.vmem %s0, %s346
        %s348 = smul.u32 2, %s25
      $region40: #{sam_forward.1} parent=35 // pred_fallthru
        _
      // Predicated region
      $region41: #{sam_forward.1} parent=35 // pred_check
        %p349 = pneg %p79
      $region42: #{sam_forward.1} parent=35 // pred_check_branch
        %351 = sbr.rel (%p349) target = $region44
      $region43: #{sam_forward.1} parent=35 // pred_region
        %p352 = scmp.lt.s32.totalorder %s24, 1
        %s353 = scalar_select %p352, %s24, 1
        %p354 = scmp.lt.s32.totalorder %s25, 0
        %s355 = scalar_select %p354, %s25, 0
        %s356 = sadd.s32 %s355, %s353
        %s357 = smul.addr %s356, 4
        %s358 = scalar_lea.vmem %s1, %s357
      $region44: #{sam_forward.1} parent=35 // pred_fallthru
        _
      // Predicated region
      $region45: #{sam_forward.1} parent=35 // pred_check
        %p359 = pneg %p107
      $region46: #{sam_forward.1} parent=35 // pred_check_branch
        %361 = sbr.rel (%p359) target = $region48
      $region47: #{sam_forward.1} parent=35 // pred_region
        %s362 = smul.u32 2, %s25
        %p363 = scmp.lt.s32.totalorder %s24, 1
        %s364 = scalar_select %p363, %s24, 1
        %p365 = scmp.lt.s32.totalorder %s362, 1
        %s366 = scalar_select %p365, %s362, 1
        %s367 = smul.addr %s364, 2
        %s368 = sadd.s32 %s366, %s367
        %s369 = smul.addr %s368, 4
        %s370 = scalar_lea.vmem %s2, %s369
        %s371 = smul.u32 2, %s25
      $region48: #{sam_forward.1} parent=35 // pred_fallthru
        _
      // Predicated region
      $region49: #{sam_forward.1} parent=35 // pred_check
        %p372 = pneg %p135
      $region50: #{sam_forward.1} parent=35 // pred_check_branch
        %374 = sbr.rel (%p372) target = $region52
      $region51: #{sam_forward.1} parent=35 // pred_region
        %p375 = scmp.lt.s32.totalorder %s24, 1
        %s376 = scalar_select %p375, %s24, 1
        %p377 = scmp.lt.s32.totalorder %s25, 0
        %s378 = scalar_select %p377, %s25, 0
        %s379 = sadd.s32 %s378, %s376
        %s380 = smul.addr %s379, 4
        %s381 = scalar_lea.vmem %s3, %s380
      $region52: #{sam_forward.1} parent=35 // pred_fallthru
        _
    $region36: #{sam_forward.1} parent=5 // pred_fallthru
      _
    %p382 = scmp.le.s32.totalorder 1, %s17
    %p383 = scmp.lt.s32.totalorder %s17, 3
    %p384 = pnand %p382, %p383
    %p385 = pneg %p384
    // Predicated region
    $region53: #{sam_forward.1} parent=5 // pred_check
      _
    $region54: #{sam_forward.1} parent=5 // pred_check_branch
      %387 = sbr.rel (%p384) target = $region56
    $region55: #{sam_forward.1} parent=5 // pred_region
      %s388 = ssub.s32 %s17, 1
      %s389 = smul.u32 2, %s27
      %p390 = scmp.lt.s32.totalorder %s26, 1
      %s391 = scalar_select %p390, %s26, 1
      %p392 = scmp.lt.s32.totalorder %s389, 1
      %s393 = scalar_select %p392, %s389, 1
      %s394 = smul.addr %s391, 2
      %s395 = sadd.s32 %s393, %s394
      %s396 = smul.addr %s395, 4
      %s397 = scalar_lea.vmem %s0, %s396
      %p398 = pneg %p57
      %p399 = pneg %p54
      %p400 = scmp.lt.s32.totalorder %s26, 1
      %s401 = scalar_select %p400, %s26, 1
      %p402 = scmp.lt.s32.totalorder %s27, 0
      %s403 = scalar_select %p402, %s27, 0
      %s404 = sadd.s32 %s403, %s401
      %s405 = smul.addr %s404, 4
      %s406 = scalar_lea.vmem %s1, %s405
      %p407 = pneg %p85
      %p408 = pneg %p82
      %s409 = smul.u32 2, %s27
      %p410 = scmp.lt.s32.totalorder %s26, 1
      %s411 = scalar_select %p410, %s26, 1
      %p412 = scmp.lt.s32.totalorder %s409, 1
      %s413 = scalar_select %p412, %s409, 1
      %s414 = smul.addr %s411, 2
      %s415 = sadd.s32 %s413, %s414
      %s416 = smul.addr %s415, 4
      %s417 = scalar_lea.vmem %s2, %s416
      %p418 = pneg %p113
      %p419 = pneg %p110
      %p420 = scmp.lt.s32.totalorder %s26, 1
      %s421 = scalar_select %p420, %s26, 1
      %p422 = scmp.lt.s32.totalorder %s27, 0
      %s423 = scalar_select %p422, %s27, 0
      %s424 = sadd.s32 %s423, %s421
      %s425 = smul.addr %s424, 4
      %s426 = scalar_lea.vmem %s3, %s425
      %p427 = pneg %p141
      %p428 = pneg %p138
      %p429 = pneg %p162
      %p430 = pneg %p159
      %p431 = pneg %p183
      %p432 = pneg %p180
      %p433 = pneg %p204
      %p434 = pneg %p201
      %p435 = pneg %p225
      %p436 = pneg %p222
      %p437 = pneg %p246
      %p438 = pneg %p243
      %p439 = pneg %p274
      %p440 = pneg %p271
      %s441 = smul.u32 2, %s27
      %p442 = scmp.lt.s32.totalorder %s26, 1
      %s443 = scalar_select %p442, %s26, 1
      %p444 = scmp.lt.s32.totalorder %s441, 1
      %s445 = scalar_select %p444, %s441, 1
      %s446 = smul.addr %s443, 2
      %s447 = sadd.s32 %s445, %s446
      %s448 = smul.addr %s447, 4
      %s449 = scalar_lea.vmem %s9, %s448
      %p450 = pneg %p302
      %p451 = pneg %p299
      %s452 = smul.u32 2, %s27
      %p453 = scmp.lt.s32.totalorder %s26, 1
      %s454 = scalar_select %p453, %s26, 1
      %p455 = scmp.lt.s32.totalorder %s452, 1
      %s456 = scalar_select %p455, %s452, 1
      %s457 = smul.addr %s454, 2
      %s458 = sadd.s32 %s456, %s457
      %s459 = smul.addr %s458, 4
      %s460 = scalar_lea.vmem %s10, %s459
      %s461 = smul.u32 2, %s27
      %p462 = scmp.lt.s32.totalorder %s26, 1
      %s463 = scalar_select %p462, %s26, 1
      %p464 = scmp.lt.s32.totalorder %s461, 1
      %s465 = scalar_select %p464, %s461, 1
      %s466 = smul.addr %s463, 2
      %s467 = sadd.s32 %s465, %s466
      %s468 = smul.addr %s467, 4
      %s469 = scalar_lea.vmem %s0, %s468
      %s470 = smul.u32 2, %s27
      %p471 = scmp.lt.s32.totalorder %s26, 1
      %s472 = scalar_select %p471, %s26, 1
      %p473 = scmp.lt.s32.totalorder %s27, 0
      %s474 = scalar_select %p473, %s27, 0
      %s475 = sadd.s32 %s474, %s472
      %s476 = smul.addr %s475, 4
      %s477 = scalar_lea.vmem %s1, %s476
      %s478 = smul.u32 2, %s27
      %p479 = scmp.lt.s32.totalorder %s26, 1
      %s480 = scalar_select %p479, %s26, 1
      %p481 = scmp.lt.s32.totalorder %s478, 1
      %s482 = scalar_select %p481, %s478, 1
      %s483 = smul.addr %s480, 2
      %s484 = sadd.s32 %s482, %s483
      %s485 = smul.addr %s484, 4
      %s486 = scalar_lea.vmem %s2, %s485
      %s487 = smul.u32 2, %s27
      %p488 = scmp.lt.s32.totalorder %s26, 1
      %s489 = scalar_select %p488, %s26, 1
      %p490 = scmp.lt.s32.totalorder %s27, 0
      %s491 = scalar_select %p490, %s27, 0
      %s492 = sadd.s32 %s491, %s489
      %s493 = smul.addr %s492, 4
      %s494 = scalar_lea.vmem %s3, %s493
      %s495 = smul.u32 2, %s27
      %p496 = scmp.lt.s32.totalorder %s26, 1
      %s497 = scalar_select %p496, %s26, 1
      %p498 = scmp.lt.s32.totalorder %s495, 1
      %s499 = scalar_select %p498, %s495, 1
      %s500 = smul.addr %s497, 2
      %s501 = sadd.s32 %s499, %s500
      %s502 = smul.addr %s501, 4
      %s503 = scalar_lea.vmem %s9, %s502
      %s504 = smul.u32 2, %s27
      %s505 = smul.u32 2, %s27
      %p506 = scmp.lt.s32.totalorder %s26, 1
      %s507 = scalar_select %p506, %s26, 1
      %p508 = scmp.lt.s32.totalorder %s505, 1
      %s509 = scalar_select %p508, %s505, 1
      %s510 = smul.addr %s507, 2
      %s511 = sadd.s32 %s509, %s510
      %s512 = smul.addr %s511, 4
      %s513 = scalar_lea.vmem %s10, %s512
      %s514 = smul.u32 2, %s27
      %v515 = vld [vmem:[%s4] ss:$2 sm:$0x7]
      %s516 = scalar_lea.vmem %s4, 1
      %v517 = vld [vmem:[%s516] ss:$2 sm:$0x7]
      %vm518 = vcmask 1044472
      %519 = vst.msk [vmem:[#allocation2] sm:$0xf] %vm518, 0.0
      %vm520 = vcmask 527872
      %521 = vst.msk [vmem:[#allocation2 + $0xc] sm:$0xf] %vm520, 0.0
      %v522 = vld [vmem:[%s477] sm:$0xf]
      %vm523 = vcmask 257024
      %524 = vst.msk [vmem:[#allocation2 + $0x4] sm:$0xf] %vm523, %v522
      %v525 = vld [vmem:[%s469] sm:$0xff]
      %527 = vrot.lane.b32.xlu0 %v525, 32
      %v528 = vpop.permute.xlu0 %527
      %v529 = vrot.slane %v528, 4
      %vm530 = vcmask 261120
      %v531 = vsel %vm530, %v529, %v528
      %vm534 = vcmask 1043712
      %vm535 = vcmask 1047556
      %vm536 = vmor %vm535, %vm534
      %537 = vst.msk [vmem:[#allocation2 + $0x4] sm:$0xff] %vm536, %v531
      %538 = vst.msk [vmem:[#allocation2 + $0xc] sm:$0xf] %vm523, %v529
      %vm539 = vcmask 519424
      %540 = vst.msk [vmem:[#allocation2 + $0xc] sm:$0xf] %vm539, %v522
      %v541 = vld [vmem:[#allocation2] sm:$0xff]
      %v542 = vld [vmem:[#allocation2 + $0x8] sm:$0xff]
      %v544 = vlaneseq
      %v545 = vshrl.u32 %v544, 7
      %v546 = vsub.s32 0, %v545
      %v547 = vrot.slane %v515, %v546
      %v548 = vlaneseq
      %v549 = vshrl.u32 %v548, 7
      %v550 = vsub.s32 1, %v549
      %v551 = vrot.slane %v515, %v550
      %v552 = vlaneseq
      %v553 = vshrl.u32 %v552, 7
      %v554 = vsub.s32 2, %v553
      %v555 = vrot.slane %v515, %v554
      %v556 = vcombine.low %v547, %v551
      %557 = vrot.lane.b32.xlu0 %v556, 127
      %v558 = vpop.permute.xlu0 %557
      %559 = vrot.lane.b32.xlu0 %v555, 127
      %v560 = vpop.permute.xlu0 %559
      %v561 = vrot.slane %v558, 4
      %v562 = vrot.slane %v560, 4
      %vm563 = vcmask 1039360
      %v564 = vsel %vm563, %v561, %v558
      %vm565 = vcmask 1043456
      %v566 = vsel %vm565, %v561, %v562
      %v567 = vsel %vm563, %v566, %v560
      %v570 = vmul.f32 %v541, %v564
      %v571 = vmul.f32 %v542, %v567
      %v572 = vld [vmem:[#allocation2 + $0x4] sm:$0xff]
      %v573 = vld [vmem:[#allocation2 + $0xc] sm:$0xf]
      %v575 = vlaneseq
      %v576 = vshrl.u32 %v575, 7
      %v577 = vsub.s32 0, %v576
      %v578 = vrot.slane %v517, %v577
      %v579 = vlaneseq
      %v580 = vshrl.u32 %v579, 7
      %v581 = vsub.s32 1, %v580
      %v582 = vrot.slane %v517, %v581
      %v583 = vlaneseq
      %v584 = vshrl.u32 %v583, 7
      %v585 = vsub.s32 2, %v584
      %v586 = vrot.slane %v517, %v585
      %v587 = vcombine.low %v578, %v582
      %588 = vrot.lane.b32.xlu0 %v587, 1
      %v589 = vpop.permute.xlu0 %588
      %590 = vrot.lane.b32.xlu0 %v586, 1
      %v591 = vpop.permute.xlu0 %590
      %v592 = vrot.slane %v589, 4
      %vm593 = vcmask 7168
      %v594 = vsel %vm593, %v592, %v589
      %v595 = vsel %vm593, %v592, %v591
      %v598 = vmul.f32 %v572, %v594
      %v599 = vmul.f32 %v573, %v595
      %600 = vrot.lane.b32.xlu0 %v556, 15
      %v601 = vpop.permute.xlu0 %600
      %602 = vrot.lane.b32.xlu0 %v555, 15
      %v603 = vpop.permute.xlu0 %602
      %v604 = vrot.slane %v601, 4
      %vm605 = vcmask 121856
      %v606 = vsel %vm605, %v604, %v601
      %v607 = vsel %vm605, %v604, %v603
      %v610 = vmul.f32 %v572, %v606
      %v611 = vmul.f32 %v573, %v607
      %612 = vrot.lane.b32.xlu0 %v587, 17
      %v613 = vpop.permute.xlu0 %612
      %614 = vrot.lane.b32.xlu0 %v586, 17
      %v615 = vpop.permute.xlu0 %614
      %v616 = vrot.slane %v613, 4
      %vm617 = vcmask 138240
      %v618 = vsel %vm617, %v616, %v613
      %v619 = vsel %vm617, %v616, %v615
      %v622 = vmul.f32 %v572, %v618
      %v623 = vmul.f32 %v573, %v619
      %624 = vrot.lane.b32.xlu0 %v556, 31
      %v625 = vpop.permute.xlu0 %624
      %626 = vrot.lane.b32.xlu0 %v555, 31
      %v627 = vpop.permute.xlu0 %626
      %v628 = vrot.slane %v625, 4
      %vm629 = vcmask 252928
      %v630 = vsel %vm629, %v628, %v625
      %v631 = vsel %vm629, %v628, %v627
      %v634 = vmul.f32 %v572, %v630
      %v635 = vmul.f32 %v573, %v631
      %636 = vrot.lane.b32.xlu0 %v587, 33
      %v637 = vpop.permute.xlu0 %636
      %638 = vrot.lane.b32.xlu0 %v586, 33
      %v639 = vpop.permute.xlu0 %638
      %v640 = vrot.slane %v637, 4
      %vm641 = vcmask 269312
      %v642 = vsel %vm641, %v640, %v637
      %v643 = vsel %vm641, %v640, %v639
      %v646 = vmul.f32 %v572, %v642
      %v647 = vmul.f32 %v573, %v643
      %v650 = vcombine.high %v570, %v570
      %v651 = vcombine.high %v571, %v571
      %v656 = vcombine.low %v572, %v572
      %v657 = vcombine.low %v573, %v573
      %658 = vrot.lane.b32.xlu0 %v656, 127
      %v659 = vpop.permute.xlu0 %658
      %660 = vrot.lane.b32.xlu0 %v572, 127
      %v661 = vpop.permute.xlu0 %660
      %662 = vrot.lane.b32.xlu0 %v657, 127
      %v663 = vpop.permute.xlu0 %662
      %v664 = vsel %vm563, %v659, %v661
      %v665 = vsel %vm563, %v661, %v663
      %v672 = vcombine.high %v598, %v598
      %673 = vrot.lane.b32.xlu0 %v598, 126
      %v674 = vpop.permute.xlu0 %673
      %675 = vrot.lane.b32.xlu0 %v672, 126
      %v676 = vpop.permute.xlu0 %675
      %677 = vrot.lane.b32.xlu0 %v599, 126
      %v678 = vpop.permute.xlu0 %677
      %vm679 = vcmask 1031168
      %v680 = vsel %vm679, %v674, %v676
      %v681 = vsel %vm679, %v676, %v678
      %v688 = vcombine.low %v610, %v610
      %v689 = vcombine.low %v611, %v611
      %690 = vrot.lane.b32.xlu0 %v688, 112
      %v691 = vpop.permute.xlu0 %690
      %692 = vrot.lane.b32.xlu0 %v610, 112
      %v693 = vpop.permute.xlu0 %692
      %694 = vrot.lane.b32.xlu0 %v689, 112
      %v695 = vpop.permute.xlu0 %694
      %vm696 = vcmask 916480
      %v697 = vsel %vm696, %v691, %v693
      %v698 = vsel %vm696, %v693, %v695
      %v703 = vcombine.high %v572, %v572
      %704 = vrot.lane.b32.xlu0 %v572, 111
      %v705 = vpop.permute.xlu0 %704
      %706 = vrot.lane.b32.xlu0 %v703, 111
      %v707 = vpop.permute.xlu0 %706
      %708 = vrot.lane.b32.xlu0 %v573, 111
      %v709 = vpop.permute.xlu0 %708
      %vm710 = vcmask 908288
      %v711 = vsel %vm710, %v705, %v707
      %v712 = vsel %vm710, %v707, %v709
      %v719 = vcombine.low %v622, %v622
      %v720 = vcombine.low %v623, %v623
      %721 = vrot.lane.b32.xlu0 %v719, 110
      %v722 = vpop.permute.xlu0 %721
      %723 = vrot.lane.b32.xlu0 %v622, 110
      %v724 = vpop.permute.xlu0 %723
      %725 = vrot.lane.b32.xlu0 %v720, 110
      %v726 = vpop.permute.xlu0 %725
      %vm727 = vcmask 900096
      %v728 = vsel %vm727, %v722, %v724
      %v729 = vsel %vm727, %v724, %v726
      %v736 = vcombine.high %v634, %v634
      %737 = vrot.lane.b32.xlu0 %v634, 96
      %v738 = vpop.permute.xlu0 %737
      %739 = vrot.lane.b32.xlu0 %v736, 96
      %v740 = vpop.permute.xlu0 %739
      %741 = vrot.lane.b32.xlu0 %v635, 96
      %v742 = vpop.permute.xlu0 %741
      %vm743 = vcmask 785408
      %v744 = vsel %vm743, %v738, %v740
      %v745 = vsel %vm743, %v740, %v742
      %750 = vrot.lane.b32.xlu0 %v656, 95
      %v751 = vpop.permute.xlu0 %750
      %752 = vrot.lane.b32.xlu0 %v572, 95
      %v753 = vpop.permute.xlu0 %752
      %754 = vrot.lane.b32.xlu0 %v657, 95
      %v755 = vpop.permute.xlu0 %754
      %vm756 = vcmask 777216
      %v757 = vsel %vm756, %v751, %v753
      %v758 = vsel %vm756, %v753, %v755
      %v765 = vcombine.high %v646, %v646
      %766 = vrot.lane.b32.xlu0 %v646, 94
      %v767 = vpop.permute.xlu0 %766
      %768 = vrot.lane.b32.xlu0 %v765, 94
      %v769 = vpop.permute.xlu0 %768
      %770 = vrot.lane.b32.xlu0 %v647, 94
      %v771 = vpop.permute.xlu0 %770
      %vm772 = vcmask 769024
      %v773 = vsel %vm772, %v767, %v769
      %v774 = vsel %vm772, %v769, %v771
      %v775 = vsel %vm565, %v570, %v659
      %v776 = vsel %vm565, %v650, %v664
      %v777 = vsel %vm565, %v571, %v665
      %v778 = vsel %vm565, %v651, %v663
      %v779 = vsel %vm565, %v674, %v691
      %v780 = vsel %vm565, %v680, %v697
      %v781 = vsel %vm565, %v681, %v698
      %v782 = vsel %vm565, %v678, %v695
      %v783 = vsel %vm565, %v705, %v722
      %v784 = vsel %vm565, %v711, %v728
      %v785 = vsel %vm565, %v712, %v729
      %v786 = vsel %vm565, %v709, %v726
      %v787 = vsel %vm565, %v738, %v751
      %v788 = vsel %vm565, %v744, %v757
      %v789 = vsel %vm565, %v745, %v758
      %v790 = vsel %vm565, %v742, %v755
      %v791 = vld [vmem:[%s5] sm:$0x7f]
      %v792 = vld [vmem:[%s6] sm:$0x7f]
      %794 = vset.pattern.permute.xlu0 0
      %795 = vperm.xlu0 %794, %v792
      %v796 = vpop.permute.xlu0 %795
      %814 = vrot.lane.b32.xlu0 %v775, 1
      %v815 = vpop.permute.xlu0 %814
      %816 = vrot.lane.b32.xlu0 %v776, 1
      %v817 = vpop.permute.xlu0 %816
      %818 = vrot.lane.b32.xlu0 %v777, 1
      %v819 = vpop.permute.xlu0 %818
      %820 = vrot.lane.b32.xlu0 %v778, 1
      %v821 = vpop.permute.xlu0 %820
      %822 = vrot.lane.b32.xlu0 %v779, 1
      %v823 = vpop.permute.xlu0 %822
      %824 = vrot.lane.b32.xlu0 %v780, 1
      %v825 = vpop.permute.xlu0 %824
      %826 = vrot.lane.b32.xlu0 %v781, 1
      %v827 = vpop.permute.xlu0 %826
      %828 = vrot.lane.b32.xlu0 %v782, 1
      %v829 = vpop.permute.xlu0 %828
      %830 = vrot.lane.b32.xlu0 %v783, 1
      %v831 = vpop.permute.xlu0 %830
      %832 = vrot.lane.b32.xlu0 %v784, 1
      %v833 = vpop.permute.xlu0 %832
      %834 = vrot.lane.b32.xlu0 %v785, 1
      %v835 = vpop.permute.xlu0 %834
      %836 = vrot.lane.b32.xlu0 %v786, 1
      %v837 = vpop.permute.xlu0 %836
      %838 = vrot.lane.b32.xlu0 %v787, 1
      %v839 = vpop.permute.xlu0 %838
      %840 = vrot.lane.b32.xlu0 %v788, 1
      %v841 = vpop.permute.xlu0 %840
      %842 = vrot.lane.b32.xlu0 %v789, 1
      %v843 = vpop.permute.xlu0 %842
      %844 = vrot.lane.b32.xlu0 %v790, 1
      %v845 = vpop.permute.xlu0 %844
      %846 = vrot.lane.b32.xlu0 %v767, 1
      %v847 = vpop.permute.xlu0 %846
      %848 = vrot.lane.b32.xlu0 %v773, 1
      %v849 = vpop.permute.xlu0 %848
      %850 = vrot.lane.b32.xlu0 %v774, 1
      %v851 = vpop.permute.xlu0 %850
      %852 = vrot.lane.b32.xlu0 %v771, 1
      %v853 = vpop.permute.xlu0 %852
      %v854 = vsel %vm593, %v815, %v817
      %v855 = vsel %vm593, %v817, %v819
      %v856 = vsel %vm593, %v819, %v821
      %v857 = vsel %vm593, %v823, %v825
      %v858 = vsel %vm593, %v825, %v827
      %v859 = vsel %vm593, %v827, %v829
      %v860 = vsel %vm593, %v831, %v833
      %v861 = vsel %vm593, %v833, %v835
      %v862 = vsel %vm593, %v835, %v837
      %v863 = vsel %vm593, %v839, %v841
      %v864 = vsel %vm593, %v841, %v843
      %v865 = vsel %vm593, %v843, %v845
      %v866 = vsel %vm593, %v847, %v849
      %v867 = vsel %vm593, %v849, %v851
      %v868 = vsel %vm593, %v851, %v853
      %vm881 = vcmask 293888
      %v883 = vsel %vm881, %v791, 0
      %v885 = vsel %vm565, %v866, 0
      %v887 = vsel %vm565, %v867, 0
      %v889 = vsel %vm565, %v868, 0
      %891 = vmatprep.subr.mxu0 0.0
      %892 = vmatpush1.msra.mxu0 0.0
      %893 = vmatprep.subr.mxu0 0.0
      %894 = vmatpush1.msra.mxu0 0.0
      %895 = vmatprep.subr.mxu0 0.0
      %896 = vmatpush1.msra.mxu0 0.0
      %897 = vmatprep.subr.mxu0 0.0
      %898 = vmatpush1.msra.mxu0 0.0
      %899 = vmatprep.subr.mxu0 0.0
      %900 = vmatpush1.msra.mxu0 0.0
      %901 = vmatprep.subr.mxu0 0.0
      %902 = vmatpush1.msra.mxu0 0.0
      %903 = vmatprep.subr.mxu0 0.0
      %904 = vmatpush1.msra.mxu0 0.0
      %905 = vmatprep.subr.mxu0 0.0
      %906 = vmatpush1.msra.mxu0 0.0
      %907 = vmatprep.subr.mxu0 0.0
      %908 = vmatpush1.msra.mxu0 0.0
      %909 = vmatprep.subr.mxu0 0.0
      %910 = vmatpush1.msra.mxu0 0.0
      %911 = vmatprep.subr.mxu0 0.0
      %912 = vmatpush1.msra.mxu0 0.0
      %913 = vmatprep.subr.mxu0 %v887
      %914 = vmatpush1.msra.mxu0 %v885
      %915 = vmatprep.subr.mxu0 %v864
      %916 = vmatpush1.msra.mxu0 %v863
      %917 = vmatprep.subr.mxu0 %v861
      %918 = vmatpush1.msra.mxu0 %v860
      %919 = vmatprep.subr.mxu0 %v858
      %920 = vmatpush1.msra.mxu0 %v857
      %921 = vmatprep.subr.mxu0 %v855
      %922 = vmatpush1.msra.mxu0 %v854
      %923 = vmatprep.subr.mxu0 0.0
      %924 = vmatpush2.msra.mxu0 0.0
      %925 = vmatprep.subr.mxu0 0.0
      %926 = vmatpush2.msra.mxu0 0.0
      %927 = vmatprep.subr.mxu0 0.0
      %928 = vmatpush2.msra.mxu0 0.0
      %929 = vmatprep.subr.mxu0 0.0
      %930 = vmatpush2.msra.mxu0 0.0
      %931 = vmatprep.subr.mxu0 0.0
      %932 = vmatpush2.msra.mxu0 0.0
      %933 = vmatprep.subr.mxu0 0.0
      %934 = vmatpush2.msra.mxu0 0.0
      %935 = vmatprep.subr.mxu0 0.0
      %936 = vmatpush2.msra.mxu0 0.0
      %937 = vmatprep.subr.mxu0 0.0
      %938 = vmatpush2.msra.mxu0 0.0
      %939 = vmatprep.subr.mxu0 0.0
      %940 = vmatpush2.msra.mxu0 0.0
      %941 = vmatprep.subr.mxu0 0.0
      %942 = vmatpush2.msra.mxu0 0.0
      %943 = vmatprep.subr.mxu0 0.0
      %944 = vmatpush2.msra.mxu0 0.0
      %945 = vmatprep.subr.mxu0 0.0
      %946 = vmatpush2.msra.mxu0 0.0
      %947 = vmatprep.subr.mxu0 0.0
      %948 = vmatpush2.msra.mxu0 0.0
      %949 = vmatprep.subr.mxu0 0.0
      %950 = vmatpush2.msra.mxu0 0.0
      %951 = vmatprep.subr.mxu0 0.0
      %952 = vmatpush2.msra.mxu0 0.0
      %953 = vmatprep.subr.mxu0 0.0
      %954 = vmatpush2.msra.mxu0 0.0
      %955 = vmatprep.mubr.f32.mxu0 0.0
      %956 = vmatmul.mubr.f32.gmra.mxu0 %v883
      %v957 = vpop.f32.mrf.mxu0
      %v958 = vadd.f32 %v796, %v957
      %v959 = vpop.f32.mrf.mxu0
      %v960 = vadd.f32 %v796, %v959
      %961 = vdwg.mxu0
      %962 = vmatprep.subr.mxu0 0.0
      %963 = vmatpush1.msra.mxu0 0.0
      %964 = vmatprep.subr.mxu0 0.0
      %965 = vmatpush1.msra.mxu0 0.0
      %966 = vmatprep.subr.mxu0 0.0
      %967 = vmatpush1.msra.mxu0 0.0
      %968 = vmatprep.subr.mxu0 0.0
      %969 = vmatpush1.msra.mxu0 0.0
      %970 = vmatprep.subr.mxu0 0.0
      %971 = vmatpush1.msra.mxu0 0.0
      %972 = vmatprep.subr.mxu0 0.0
      %973 = vmatpush1.msra.mxu0 0.0
      %974 = vmatprep.subr.mxu0 0.0
      %975 = vmatpush1.msra.mxu0 0.0
      %976 = vmatprep.subr.mxu0 0.0
      %977 = vmatpush1.msra.mxu0 0.0
      %978 = vmatprep.subr.mxu0 0.0
      %979 = vmatpush1.msra.mxu0 0.0
      %980 = vmatprep.subr.mxu0 0.0
      %981 = vmatpush1.msra.mxu0 0.0
      %982 = vmatprep.subr.mxu0 0.0
      %983 = vmatpush1.msra.mxu0 0.0
      %984 = vmatprep.subr.mxu0 0.0
      %985 = vmatpush1.msra.mxu0 %v889
      %986 = vmatprep.subr.mxu0 0.0
      %987 = vmatpush1.msra.mxu0 %v865
      %988 = vmatprep.subr.mxu0 0.0
      %989 = vmatpush1.msra.mxu0 %v862
      %990 = vmatprep.subr.mxu0 0.0
      %991 = vmatpush1.msra.mxu0 %v859
      %992 = vmatprep.subr.mxu0 0.0
      %993 = vmatpush1.msra.mxu0 %v856
      %994 = vmatprep.subr.mxu0 0.0
      %995 = vmatpush2.msra.mxu0 0.0
      %996 = vmatprep.subr.mxu0 0.0
      %997 = vmatpush2.msra.mxu0 0.0
      %998 = vmatprep.subr.mxu0 0.0
      %999 = vmatpush2.msra.mxu0 0.0
      %1000 = vmatprep.subr.mxu0 0.0
      %1001 = vmatpush2.msra.mxu0 0.0
      %1002 = vmatprep.subr.mxu0 0.0
      %1003 = vmatpush2.msra.mxu0 0.0
      %1004 = vmatprep.subr.mxu0 0.0
      %1005 = vmatpush2.msra.mxu0 0.0
      %1006 = vmatprep.subr.mxu0 0.0
      %1007 = vmatpush2.msra.mxu0 0.0
      %1008 = vmatprep.subr.mxu0 0.0
      %1009 = vmatpush2.msra.mxu0 0.0
      %1010 = vmatprep.subr.mxu0 0.0
      %1011 = vmatpush2.msra.mxu0 0.0
      %1012 = vmatprep.subr.mxu0 0.0
      %1013 = vmatpush2.msra.mxu0 0.0
      %1014 = vmatprep.subr.mxu0 0.0
      %1015 = vmatpush2.msra.mxu0 0.0
      %1016 = vmatprep.subr.mxu0 0.0
      %1017 = vmatpush2.msra.mxu0 0.0
      %1018 = vmatprep.subr.mxu0 0.0
      %1019 = vmatpush2.msra.mxu0 0.0
      %1020 = vmatprep.subr.mxu0 0.0
      %1021 = vmatpush2.msra.mxu0 0.0
      %1022 = vmatprep.subr.mxu0 0.0
      %1023 = vmatpush2.msra.mxu0 0.0
      %1024 = vmatprep.subr.mxu0 0.0
      %1025 = vmatpush2.msra.mxu0 0.0
      %1026 = vmatprep.mubr.f32.mxu0 0.0
      %1027 = vmatmul.mubr.f32.gmra.mxu0 %v883
      %v1028 = vpop.f32.mrf.mxu0
      %v1029 = vadd.f32 %v796, %v1028
      %v1030 = vpop.f32.mrf.mxu0
      %1031 = vdwg.mxu0
      %v1032 = vld [vmem:[%s494] sm:$0x7]
      %v1033 = vld [vmem:[%s486] sm:$0x77]
      %v1035 = vcombine.high %v1033, %v1033
      %1036 = vrot.lane.b32.xlu0 %v1033, 16
      %v1037 = vpop.permute.xlu0 %1036
      %1038 = vrot.lane.b32.xlu0 %v1035, 16
      %v1039 = vpop.permute.xlu0 %1038
      %vm1040 = vcmask 130048
      %v1041 = vsel %vm1040, %v1037, %v1039
      %v1044 = vsel %vm1040, %v1032, %v1037
      %v1045 = vsel %vm1040, %v1039, %v1032
      %v1048 = vrot.slane %v1044, 4
      %v1049 = vrot.slane %v1041, 4
      %v1050 = vrot.slane %v1045, 4
      %v1054 = vadd.f32 %v958, %v1048
      %v1055 = vadd.f32 %v960, %v1049
      %v1056 = vadd.f32 %v1029, %v1050
      %v1060 = vcombine.high %v1054, %v1055
      %v1061 = vcombine.high %v1056, %v1056
      %1062 = vrot.lane.b32.xlu0 %v1060, 112
      %v1063 = vpop.permute.xlu0 %1062
      %1064 = vrot.lane.b32.xlu0 %v1061, 112
      %v1065 = vpop.permute.xlu0 %1064
      %v1066 = vrot.slane %v1063, 4
      %v1067 = vrot.slane %v1065, 4
      %v1068 = vsel %vm565, %v1066, %v1067
      %v1069 = vsel %vm696, %v1063, %v1068
      %1071 = vst [vmem:[%s513] sm:$0x77] %v1069
      %p1072 = scmp.gt.s32.totalorder %s27, 0
      %s1073 = scalar_select %p1072, 1, 0
      %s1074 = scvt.s32.f32 %s1073
      %p1075 = scmp.lt.s32.totalorder %s27, 0
      %s1076 = scalar_select %p1075, 1, 0
      %s1077 = scvt.s32.f32 %s1076
      %v1078 = vstv %s1074
      %v1079 = vstv %s1077
      %v1080 = vsel %vm1040, %v1078, 1.0
      %v1081 = vsel %vm1040, 1.0, %v1079
      %vm1082 = vcmask 1043448
      %1083 = vst.msk [vmem:[#allocation3] sm:$0x7] %vm1082, 0.0
      %vm1084 = vcmask 264448
      %1085 = vst.msk [vmem:[#allocation3 + $0xc] sm:$0x7] %vm1084, 0.0
      %v1086 = vlaneseq
      %v1087 = vshrl.u32 %v1086, 7
      %v1088 = vsub.s32 0, %v1087
      %v1089 = vrot.slane %v1080, %v1088
      %v1090 = vlaneseq
      %v1091 = vshrl.u32 %v1090, 7
      %v1092 = vsub.s32 0, %v1091
      %v1093 = vlaneseq
      %v1094 = vshrl.u32 %v1093, 7
      %v1095 = vsub.s32 0, %v1094
      %v1096 = vrot.slane %v1081, %v1095
      %v1097 = vmul.f32 %v1054, %v1089
      %v1098 = vmul.f32 %v1055, 1.0
      %v1099 = vmul.f32 %v1056, %v1096
      %v1103 = vcombine.high %v1097, %v1098
      %v1104 = vcombine.high %v1099, %v1099
      %1107 = vst [vmem:[#allocation3 + $0x4] sm:$0x77] %v1103
      %vm1108 = vcmask 256000
      %1109 = vst.msk [vmem:[#allocation3 + $0xc] sm:$0x7] %vm1108, %v1104
      %v1110 = vld [vmem:[#allocation3] sm:$0x77]
      %v1111 = vld [vmem:[#allocation3 + $0x8] sm:$0x7]
      %v1113 = vmul.f32 %v1110, %v564
      %v1114 = vmul.f32 %v1111, %v561
      %v1115 = vld [vmem:[#allocation3 + $0x4] sm:$0x77]
      %v1116 = vld [vmem:[#allocation3 + $0xc] sm:$0x7]
      %v1118 = vmul.f32 %v1115, %v594
      %v1119 = vmul.f32 %v1116, %v592
      %v1121 = vmul.f32 %v1115, %v606
      %v1122 = vmul.f32 %v1116, %v604
      %v1124 = vmul.f32 %v1115, %v618
      %v1125 = vmul.f32 %v1116, %v616
      %v1127 = vmul.f32 %v1115, %v630
      %v1128 = vmul.f32 %v1116, %v628
      %v1130 = vmul.f32 %v1115, %v642
      %v1131 = vmul.f32 %v1116, %v640
      %v1133 = vcombine.high %v1113, %v1113
      %v1136 = vcombine.high %v1115, %v1115
      %v1137 = vrot.slane %v1115, 5
      %v1138 = vrot.slane %v1136, 5
      %1139 = vrot.lane.b32.xlu0 %v1137, 127
      %v1140 = vpop.permute.xlu0 %1139
      %1141 = vrot.lane.b32.xlu0 %v1138, 127
      %v1142 = vpop.permute.xlu0 %1141
      %v1143 = vsel %vm563, %v1140, %v1142
      %v1149 = vcombine.high %v1118, %v1118
      %v1150 = vrot.slane %v1118, 2
      %v1151 = vrot.slane %v1149, 2
      %v1152 = vrot.slane %v1119, 2
      %1153 = vrot.lane.b32.xlu0 %v1150, 126
      %v1154 = vpop.permute.xlu0 %1153
      %1155 = vrot.lane.b32.xlu0 %v1151, 126
      %v1156 = vpop.permute.xlu0 %1155
      %1157 = vrot.lane.b32.xlu0 %v1152, 126
      %v1158 = vpop.permute.xlu0 %1157
      %v1159 = vsel %vm679, %v1154, %v1156
      %v1160 = vsel %vm679, %v1156, %v1158
      %v1166 = vcombine.high %v1121, %v1121
      %v1167 = vrot.slane %v1121, 7
      %v1168 = vrot.slane %v1166, 7
      %v1169 = vrot.slane %v1122, 7
      %1170 = vrot.lane.b32.xlu0 %v1167, 112
      %v1171 = vpop.permute.xlu0 %1170
      %1172 = vrot.lane.b32.xlu0 %v1168, 112
      %v1173 = vpop.permute.xlu0 %1172
      %1174 = vrot.lane.b32.xlu0 %v1169, 112
      %v1175 = vpop.permute.xlu0 %1174
      %v1176 = vsel %vm696, %v1171, %v1173
      %v1177 = vsel %vm696, %v1173, %v1175
      %v1182 = vcombine.low %v1115, %v1115
      %v1183 = vcombine.low %v1116, %v1116
      %1184 = vrot.lane.b32.xlu0 %v1182, 111
      %v1185 = vpop.permute.xlu0 %1184
      %1186 = vrot.lane.b32.xlu0 %v1115, 111
      %v1187 = vpop.permute.xlu0 %1186
      %1188 = vrot.lane.b32.xlu0 %v1183, 111
      %v1189 = vpop.permute.xlu0 %1188
      %v1190 = vsel %vm710, %v1185, %v1187
      %v1191 = vsel %vm710, %v1187, %v1189
      %v1197 = vcombine.high %v1124, %v1124
      %v1198 = vrot.slane %v1124, 1
      %v1199 = vrot.slane %v1197, 1
      %v1200 = vrot.slane %v1125, 1
      %1201 = vrot.lane.b32.xlu0 %v1198, 110
      %v1202 = vpop.permute.xlu0 %1201
      %1203 = vrot.lane.b32.xlu0 %v1199, 110
      %v1204 = vpop.permute.xlu0 %1203
      %1205 = vrot.lane.b32.xlu0 %v1200, 110
      %v1206 = vpop.permute.xlu0 %1205
      %v1207 = vsel %vm727, %v1202, %v1204
      %v1208 = vsel %vm727, %v1204, %v1206
      %v1214 = vcombine.high %v1127, %v1127
      %v1215 = vrot.slane %v1127, 6
      %v1216 = vrot.slane %v1214, 6
      %v1217 = vrot.slane %v1128, 6
      %1218 = vrot.lane.b32.xlu0 %v1215, 96
      %v1219 = vpop.permute.xlu0 %1218
      %1220 = vrot.lane.b32.xlu0 %v1216, 96
      %v1221 = vpop.permute.xlu0 %1220
      %1222 = vrot.lane.b32.xlu0 %v1217, 96
      %v1223 = vpop.permute.xlu0 %1222
      %v1224 = vsel %vm743, %v1219, %v1221
      %v1225 = vsel %vm743, %v1221, %v1223
      %v1229 = vrot.slane %v1115, 3
      %v1230 = vrot.slane %v1136, 3
      %v1231 = vrot.slane %v1116, 3
      %1232 = vrot.lane.b32.xlu0 %v1229, 95
      %v1233 = vpop.permute.xlu0 %1232
      %1234 = vrot.lane.b32.xlu0 %v1230, 95
      %v1235 = vpop.permute.xlu0 %1234
      %1236 = vrot.lane.b32.xlu0 %v1231, 95
      %v1237 = vpop.permute.xlu0 %1236
      %v1238 = vsel %vm756, %v1233, %v1235
      %v1239 = vsel %vm756, %v1235, %v1237
      %v1245 = vcombine.high %v1130, %v1130
      %1246 = vrot.lane.b32.xlu0 %v1130, 94
      %v1247 = vpop.permute.xlu0 %1246
      %1248 = vrot.lane.b32.xlu0 %v1245, 94
      %v1249 = vpop.permute.xlu0 %1248
      %1250 = vrot.lane.b32.xlu0 %v1131, 94
      %v1251 = vpop.permute.xlu0 %1250
      %v1252 = vsel %vm772, %v1247, %v1249
      %v1253 = vsel %vm772, %v1249, %v1251
      %vm1254 = vcmask 1042432
      %v1255 = vsel %vm1254, %v1113, %v1140
      %v1256 = vsel %vm1254, %v1133, %v1143
      %v1257 = vsel %vm1254, %v1114, %v1142
      %vm1258 = vcmask 1045504
      %v1259 = vsel %vm1258, %v1255, %v1154
      %v1260 = vsel %vm1258, %v1256, %v1159
      %v1261 = vsel %vm1258, %v1257, %v1160
      %vm1262 = vcmask 1040384
      %v1263 = vsel %vm1262, %v1154, %v1171
      %v1264 = vsel %vm1262, %v1159, %v1176
      %v1265 = vsel %vm1262, %v1160, %v1177
      %v1266 = vsel %vm565, %v1263, %v1185
      %v1267 = vsel %vm565, %v1264, %v1190
      %v1268 = vsel %vm565, %v1265, %v1191
      %vm1269 = vcmask 1046528
      %v1270 = vsel %vm1269, %v1266, %v1202
      %v1271 = vsel %vm1269, %v1267, %v1207
      %v1272 = vsel %vm1269, %v1268, %v1208
      %vm1273 = vcmask 1041408
      %v1274 = vsel %vm1273, %v1202, %v1219
      %v1275 = vsel %vm1273, %v1207, %v1224
      %v1276 = vsel %vm1273, %v1208, %v1225
      %vm1277 = vcmask 1044480
      %v1278 = vsel %vm1277, %v1274, %v1233
      %v1279 = vsel %vm1277, %v1275, %v1238
      %v1280 = vsel %vm1277, %v1276, %v1239
      %v1281 = vld [vmem:[%s7] sm:$0xf]
      %v1282 = vld [vmem:[%s8] sm:$0xf]
      %1284 = vset.pattern.permute.xlu0 0
      %1285 = vperm.xlu0 %1284, %v1282
      %v1286 = vpop.permute.xlu0 %1285
      %1297 = vrot.lane.b32.xlu0 %v1259, 1
      %v1298 = vpop.permute.xlu0 %1297
      %1299 = vrot.lane.b32.xlu0 %v1260, 1
      %v1300 = vpop.permute.xlu0 %1299
      %1301 = vrot.lane.b32.xlu0 %v1261, 1
      %v1302 = vpop.permute.xlu0 %1301
      %1303 = vrot.lane.b32.xlu0 %v1270, 1
      %v1304 = vpop.permute.xlu0 %1303
      %1305 = vrot.lane.b32.xlu0 %v1271, 1
      %v1306 = vpop.permute.xlu0 %1305
      %1307 = vrot.lane.b32.xlu0 %v1272, 1
      %v1308 = vpop.permute.xlu0 %1307
      %1309 = vrot.lane.b32.xlu0 %v1278, 1
      %v1310 = vpop.permute.xlu0 %1309
      %1311 = vrot.lane.b32.xlu0 %v1279, 1
      %v1312 = vpop.permute.xlu0 %1311
      %1313 = vrot.lane.b32.xlu0 %v1280, 1
      %v1314 = vpop.permute.xlu0 %1313
      %1315 = vrot.lane.b32.xlu0 %v1247, 1
      %v1316 = vpop.permute.xlu0 %1315
      %1317 = vrot.lane.b32.xlu0 %v1252, 1
      %v1318 = vpop.permute.xlu0 %1317
      %1319 = vrot.lane.b32.xlu0 %v1253, 1
      %v1320 = vpop.permute.xlu0 %1319
      %v1321 = vsel %vm593, %v1298, %v1300
      %v1322 = vsel %vm593, %v1300, %v1302
      %v1323 = vsel %vm593, %v1304, %v1306
      %v1324 = vsel %vm593, %v1306, %v1308
      %v1325 = vsel %vm593, %v1310, %v1312
      %v1326 = vsel %vm593, %v1312, %v1314
      %v1327 = vsel %vm593, %v1316, %v1318
      %v1328 = vsel %vm593, %v1318, %v1320
      %vm1335 = vcmask 220160
      %v1337 = vsel %vm1335, %v1281, 0
      %v1339 = vsel %vm1254, %v1327, 0
      %v1341 = vsel %vm1254, %v1328, 0
      %1343 = vmatprep.subr.mxu0 0.0
      %1344 = vmatpush1.msra.mxu0 0.0
      %1345 = vmatprep.subr.mxu0 0.0
      %1346 = vmatpush1.msra.mxu0 0.0
      %1347 = vmatprep.subr.mxu0 0.0
      %1348 = vmatpush1.msra.mxu0 0.0
      %1349 = vmatprep.subr.mxu0 0.0
      %1350 = vmatpush1.msra.mxu0 0.0
      %1351 = vmatprep.subr.mxu0 0.0
      %1352 = vmatpush1.msra.mxu0 0.0
      %1353 = vmatprep.subr.mxu0 0.0
      %1354 = vmatpush1.msra.mxu0 0.0
      %1355 = vmatprep.subr.mxu0 0.0
      %1356 = vmatpush1.msra.mxu0 0.0
      %1357 = vmatprep.subr.mxu0 0.0
      %1358 = vmatpush1.msra.mxu0 0.0
      %1359 = vmatprep.subr.mxu0 0.0
      %1360 = vmatpush1.msra.mxu0 0.0
      %1361 = vmatprep.subr.mxu0 0.0
      %1362 = vmatpush1.msra.mxu0 0.0
      %1363 = vmatprep.subr.mxu0 0.0
      %1364 = vmatpush1.msra.mxu0 0.0
      %1365 = vmatprep.subr.mxu0 0.0
      %1366 = vmatpush1.msra.mxu0 0.0
      %1367 = vmatprep.subr.mxu0 %v1341
      %1368 = vmatpush1.msra.mxu0 %v1339
      %1369 = vmatprep.subr.mxu0 %v1326
      %1370 = vmatpush1.msra.mxu0 %v1325
      %1371 = vmatprep.subr.mxu0 %v1324
      %1372 = vmatpush1.msra.mxu0 %v1323
      %1373 = vmatprep.subr.mxu0 %v1322
      %1374 = vmatpush1.msra.mxu0 %v1321
      %1375 = vmatprep.subr.mxu0 0.0
      %1376 = vmatpush2.msra.mxu0 0.0
      %1377 = vmatprep.subr.mxu0 0.0
      %1378 = vmatpush2.msra.mxu0 0.0
      %1379 = vmatprep.subr.mxu0 0.0
      %1380 = vmatpush2.msra.mxu0 0.0
      %1381 = vmatprep.subr.mxu0 0.0
      %1382 = vmatpush2.msra.mxu0 0.0
      %1383 = vmatprep.subr.mxu0 0.0
      %1384 = vmatpush2.msra.mxu0 0.0
      %1385 = vmatprep.subr.mxu0 0.0
      %1386 = vmatpush2.msra.mxu0 0.0
      %1387 = vmatprep.subr.mxu0 0.0
      %1388 = vmatpush2.msra.mxu0 0.0
      %1389 = vmatprep.subr.mxu0 0.0
      %1390 = vmatpush2.msra.mxu0 0.0
      %1391 = vmatprep.subr.mxu0 0.0
      %1392 = vmatpush2.msra.mxu0 0.0
      %1393 = vmatprep.subr.mxu0 0.0
      %1394 = vmatpush2.msra.mxu0 0.0
      %1395 = vmatprep.subr.mxu0 0.0
      %1396 = vmatpush2.msra.mxu0 0.0
      %1397 = vmatprep.subr.mxu0 0.0
      %1398 = vmatpush2.msra.mxu0 0.0
      %1399 = vmatprep.subr.mxu0 0.0
      %1400 = vmatpush2.msra.mxu0 0.0
      %1401 = vmatprep.subr.mxu0 0.0
      %1402 = vmatpush2.msra.mxu0 0.0
      %1403 = vmatprep.subr.mxu0 0.0
      %1404 = vmatpush2.msra.mxu0 0.0
      %1405 = vmatprep.subr.mxu0 0.0
      %1406 = vmatpush2.msra.mxu0 0.0
      %1407 = vmatprep.mubr.f32.mxu0 0.0
      %1408 = vmatmul.mubr.f32.gmra.mxu0 %v1337
      %v1409 = vpop.f32.mrf.mxu0
      %v1410 = vadd.f32 %v1286, %v1409
      %v1411 = vpop.f32.mrf.mxu0
      %v1412 = vadd.f32 %v1286, %v1411
      %1413 = vdwg.mxu0
      %v1414 = vxor.u32 %v1410, 2147483648
      %v1415 = vxor.u32 %v1412, 2147483648
      %v1416 = vmul.f32 %v1414, 1.442695
      %v1417 = vpow.pop %v1416
      %v1418 = vmul.f32 %v1415, 1.442695
      %v1419 = vpow.pop %v1418
      %v1420 = vadd.f32 %v1417, 1.0
      %v1421 = vadd.f32 %v1419, 1.0
      %v1422 = vrcp.pop %v1420
      %v1423 = vmul.f32 1.0, %v1422
      %v1424 = vrcp.pop %v1421
      %v1425 = vmul.f32 1.0, %v1424
      %1428 = vrot.lane.b32.xlu0 %v1423, 16
      %v1429 = vpop.permute.xlu0 %1428
      %1430 = vrot.lane.b32.xlu0 %v1425, 16
      %v1431 = vpop.permute.xlu0 %1430
      %v1432 = vsel %vm1040, %v1429, %v1431
      %v1436 = vmul.f32 %v958, %v1429
      %v1437 = vmul.f32 %v960, %v1432
      %v1438 = vmul.f32 %v1029, %v1431
      %v1439 = vld [vmem:[%s469] sm:$0xff]
      %v1441 = vcombine.high %v1439, %v1439
      %1442 = vrot.lane.b32.xlu0 %v1439, 16
      %v1443 = vpop.permute.xlu0 %1442
      %1444 = vrot.lane.b32.xlu0 %v1441, 16
      %v1445 = vpop.permute.xlu0 %1444
      %v1446 = vsel %vm1040, %v1443, %v1445
      %v1450 = vadd.f32 %v1436, %v1443
      %v1451 = vadd.f32 %v1437, %v1446
      %v1452 = vadd.f32 %v1438, %v1445
      %v1456 = vcombine.low %v1450, %v1451
      %1457 = vrot.lane.b32.xlu0 %v1456, 112
      %v1458 = vpop.permute.xlu0 %1457
      %1459 = vrot.lane.b32.xlu0 %v1452, 112
      %v1460 = vpop.permute.xlu0 %1459
      %v1461 = vrot.slane %v1458, 4
      %v1462 = vrot.slane %v1460, 4
      %v1463 = vsel %vm565, %v1461, %v1462
      %v1464 = vsel %vm696, %v1458, %v1463
      %1466 = vst [vmem:[%s503] sm:$0xff] %v1464
      %s1467 = smul.u32 2, %s27
      %p1468 = scmp.lt.s32.totalorder %s26, 1
      %s1469 = scalar_select %p1468, %s26, 1
      %p1470 = scmp.lt.s32.totalorder %s1467, 1
      %s1471 = scalar_select %p1470, %s1467, 1
      %s1472 = smul.addr %s1469, 2
      %s1473 = sadd.s32 %s1471, %s1472
      %s1474 = smul.addr %s1473, 4
      %s1475 = scalar_lea.vmem %s9, %s1474
      %s1476 = smul.u32 2, %s27
      %p1477 = scmp.lt.s32.totalorder %s26, 1
      %s1478 = scalar_select %p1477, %s26, 1
      %p1479 = scmp.lt.s32.totalorder %s1476, 1
      %s1480 = scalar_select %p1479, %s1476, 1
      %s1481 = smul.addr %s1478, 2
      %s1482 = sadd.s32 %s1480, %s1481
      %s1483 = smul.addr %s1482, 4
      %s1484 = scalar_lea.vmem %s10, %s1483
      // Predicated region
      $region57: #{sam_forward.1} parent=55 // pred_check
        %p1485 = pneg %p271
      $region58: #{sam_forward.1} parent=55 // pred_check_branch
        %1487 = sbr.rel (%p1485) target = $region60
      $region59: #{sam_forward.1} parent=55 // pred_region
        %s1488 = smul.u32 2, %s27
      $region60: #{sam_forward.1} parent=55 // pred_fallthru
        _
      // Predicated region
      $region61: #{sam_forward.1} parent=55 // pred_check
        %p1489 = pneg %p299
      $region62: #{sam_forward.1} parent=55 // pred_check_branch
        %1491 = sbr.rel (%p1489) target = $region64
      $region63: #{sam_forward.1} parent=55 // pred_region
        %s1492 = smul.u32 2, %s27
      $region64: #{sam_forward.1} parent=55 // pred_fallthru
        _
    $region56: #{sam_forward.1} parent=5 // pred_fallthru
      _
    %p1493 = scmp.le.s32.totalorder 2, %s17
    // Predicated region
    $region65: #{sam_forward.1} parent=5 // pred_check
      %p1494 = pneg %p1493
    $region66: #{sam_forward.1} parent=5 // pred_check_branch
      %1496 = sbr.rel (%p1494) target = $region68
    $region67: #{sam_forward.1} parent=5 // pred_region
      %s1497 = ssub.s32 %s17, 2
      // Predicated region
      $region69: #{sam_forward.1} parent=67 // pred_check
        %p1498 = pneg %p277
      $region70: #{sam_forward.1} parent=67 // pred_check_branch
        %1500 = sbr.rel (%p1498) target = $region72
      $region71: #{sam_forward.1} parent=67 // pred_region
        %s1501 = smul.u32 2, %s29
        %p1502 = scmp.lt.s32.totalorder %s28, 1
        %s1503 = scalar_select %p1502, %s28, 1
        %p1504 = scmp.lt.s32.totalorder %s1501, 1
        %s1505 = scalar_select %p1504, %s1501, 1
        %s1506 = smul.addr %s1503, 2
        %s1507 = sadd.s32 %s1505, %s1506
        %s1508 = smul.addr %s1507, 4
        %s1509 = scalar_lea.vmem %s9, %s1508
      $region72: #{sam_forward.1} parent=67 // pred_fallthru
        _
      // Predicated region
      $region73: #{sam_forward.1} parent=67 // pred_check
        %p1510 = pneg %p305
      $region74: #{sam_forward.1} parent=67 // pred_check_branch
        %1512 = sbr.rel (%p1510) target = $region76
      $region75: #{sam_forward.1} parent=67 // pred_region
        %s1513 = smul.u32 2, %s29
        %p1514 = scmp.lt.s32.totalorder %s28, 1
        %s1515 = scalar_select %p1514, %s28, 1
        %p1516 = scmp.lt.s32.totalorder %s1513, 1
        %s1517 = scalar_select %p1516, %s1513, 1
        %s1518 = smul.addr %s1515, 2
        %s1519 = sadd.s32 %s1517, %s1518
        %s1520 = smul.addr %s1519, 4
        %s1521 = scalar_lea.vmem %s10, %s1520
      $region76: #{sam_forward.1} parent=67 // pred_fallthru
        _
    $region68: #{sam_forward.1} parent=5 // pred_fallthru
      _
  $region6: #{sam_forward.1} parent=0 // loop_footer
    %s21 = sadd.s32 1, %s17
  $region7: #{sam_forward.1} parent=0 // loop_footer_branch
    %16 = sbr.rel target = $region3
  $region8: #{sam_forward.1} parent=0 // loop_exit
    _

</llo_original>
